<compile_context>
chip_gen: v6e
topology: v6e:2x2x1
jax: 0.10.0
libtpu: 0.0.40
codegen_flags: <defaults>
</compile_context>

<pallas_src>
import numpy as np
import jax
import jax.numpy as jnp
from jax.experimental import pallas as pl
from jax.experimental.pallas import tpu as pltpu

# ---- problem configuration (matches the module's implied globals) ----------
IN_SZ = 16                    # in_sz   : spatial size of the input
M = 8                         # M       : DCT block size
m = 4                         # m       : kept low-frequency size per block
S_IN_SZ = (IN_SZ // M) * m    # s_in_sz : spatial size of the low-freq output

FLAT_IN = IN_SZ * IN_SZ       # 256  flattened image length
FLAT_LOW = S_IN_SZ * S_IN_SZ  # 64   flattened low-freq length

BN_MAX = 1024                 # max rows (images) per grid step


def dct_matrix(n: int) -> np.ndarray:
    """Orthonormal DCT-II matrix of size n (rows are basis functions)."""
    k = np.arange(n)[:, None].astype(np.float64)
    i = np.arange(n)[None, :].astype(np.float64)
    mat = np.sqrt(2.0 / n) * np.cos(np.pi * (2.0 * i + 1.0) * k / (2.0 * n))
    mat[0, :] *= 1.0 / np.sqrt(2.0)
    return mat


def build_kron_weights():
    """Precompute the flattened-image weights W_low (256x64), W_high (256x256)."""
    T = dct_matrix(M)                   # (M, M)
    t = dct_matrix(m)                   # (m, m)
    Tm = T[:m, :]                       # (m, M)
    A = t.T @ Tm                        # (m, M)   low-freq block map
    B = Tm.T @ Tm                       # (M, M)   low-freq projector (symmetric)
    nb = IN_SZ // M
    A_big = np.kron(np.eye(nb), A)      # (S_IN_SZ, IN_SZ)
    B_big = np.kron(np.eye(nb), B)      # (IN_SZ, IN_SZ)

    # row-major vec:  vec(A X A^T) = (A ⊗ A) vec(X)
    W_low = np.kron(A_big, A_big).T                                  # (256, 64)
    W_high = (np.eye(FLAT_IN) - np.kron(B_big, B_big)).T             # (256, 256)
    return jnp.asarray(W_low, jnp.float32), jnp.asarray(W_high, jnp.float32)


def _round_up(x: int, mult: int) -> int:
    return ((x + mult - 1) // mult) * mult


# ---- Pallas kernel ----------------------------------------------------------
def asym_dct_kernel(x_ref, wl_ref, wh_ref, low_ref, high_ref):
    # x_ref   : (BN, 256)  flattened images (one row per image)
    # wl_ref  : (256, 64)  low-freq weight  (loop-invariant, constant block index)
    # wh_ref  : (256, 256) high-freq weight (loop-invariant, constant block index)
    x = x_ref[...].astype(jnp.float32)

    low = jnp.dot(x, wl_ref[...],
                  preferred_element_type=jnp.float32,
                  precision=jax.lax.Precision.HIGHEST)
    high = jnp.dot(x, wh_ref[...],
                   preferred_element_type=jnp.float32,
                   precision=jax.lax.Precision.HIGHEST)

    low_ref[...] = low.astype(low_ref.dtype)
    high_ref[...] = high.astype(high_ref.dtype)


def asym_dct_forward(x_nchw: jax.Array):
    """x_nchw: (b, c, IN_SZ, IN_SZ) ->
       (low (b, c, S_IN_SZ, S_IN_SZ), high (b, c, IN_SZ, IN_SZ))"""
    b, c, h, w = x_nchw.shape
    assert h == IN_SZ and w == IN_SZ
    N = b * c

    # Flatten every image to one lane-dense 256-wide row.
    x_flat = x_nchw.reshape(N, FLAT_IN)

    # Batch many images per grid step; pad rows to a sublane/tile-friendly count.
    BN = BN_MAX if N >= BN_MAX else _round_up(N, 8)
    N_pad = _round_up(N, BN)
    if N_pad != N:
        x_flat = jnp.pad(x_flat, ((0, N_pad - N), (0, 0)))
    grid = (N_pad // BN,)

    W_low, W_high = build_kron_weights()

    cost = pl.CostEstimate(
        flops=2 * N_pad * FLAT_IN * (FLAT_LOW + FLAT_IN),
        transcendentals=0,
        bytes_accessed=(N_pad * (FLAT_IN + FLAT_LOW + FLAT_IN)
                        + FLAT_IN * FLAT_LOW + FLAT_IN * FLAT_IN) * 4,
    )

    low_flat, high_flat = pl.pallas_call(
        asym_dct_kernel,
        out_shape=(
            jax.ShapeDtypeStruct((N_pad, FLAT_LOW), x_nchw.dtype),
            jax.ShapeDtypeStruct((N_pad, FLAT_IN), x_nchw.dtype),
        ),
        grid_spec=pltpu.PrefetchScalarGridSpec(
            num_scalar_prefetch=0,
            grid=grid,
            in_specs=[
                pl.BlockSpec((BN, FLAT_IN), lambda i: (i, 0)),
                pl.BlockSpec((FLAT_IN, FLAT_LOW), lambda i: (0, 0)),
                pl.BlockSpec((FLAT_IN, FLAT_IN), lambda i: (0, 0)),
            ],
            out_specs=[
                pl.BlockSpec((BN, FLAT_LOW), lambda i: (i, 0)),
                pl.BlockSpec((BN, FLAT_IN), lambda i: (i, 0)),
            ],
        ),
        compiler_params=pltpu.CompilerParams(
            dimension_semantics=("parallel",)),
        cost_estimate=cost,
    )(x_flat, W_low, W_high)

    low = low_flat[:N].reshape(b, c, S_IN_SZ, S_IN_SZ)
    high = high_flat[:N].reshape(b, c, IN_SZ, IN_SZ)
    return low, high


# ---- pure numpy reference (mirrors the PyTorch double loop) -----------------
def reference_forward(x_np: np.ndarray):
    bsz, c, _, _ = x_np.shape
    T = dct_matrix(M)
    t = dct_matrix(m)
    low = np.zeros((bsz, c, S_IN_SZ, S_IN_SZ), dtype=np.float64)
    high = np.zeros((bsz, c, IN_SZ, IN_SZ), dtype=np.float64)
    xd = x_np.astype(np.float64)
    for i in range(IN_SZ // M):
        for j in range(IN_SZ // M):
            blk = xd[:, :, i * M:(i + 1) * M, j * M:(j + 1) * M]
            D = T @ blk @ T.T
            low_blk = t.T @ D[:, :, :m, :m] @ t
            low[:, :, i * m:(i + 1) * m, j * m:(j + 1) * m] = low_blk
            Dh = D.copy()
            Dh[:, :, :m, :m] = 0.0
            high[:, :, i * M:(i + 1) * M, j * M:(j + 1) * M] = T.T @ Dh @ T
    return low.astype(x_np.dtype), high.astype(x_np.dtype)


if __name__ == "__main__":
    key = jax.random.PRNGKey(0)
    b, c = 2, 4
    x = jax.random.normal(key, (b, c, IN_SZ, IN_SZ), dtype=jnp.float32)

    low, high = asym_dct_forward(x)
    jax.block_until_ready((low, high))

    low_ref, high_ref = reference_forward(np.asarray(x))
    assert np.allclose(np.asarray(low), low_ref, atol=1e-4, rtol=1e-4)
    assert np.allclose(np.asarray(high), high_ref, atol=1e-4, rtol=1e-4)

    print("KERNEL_OK")
</pallas_src>

<mosaic_0001>
module attributes {stable_mosaic.version = 11 : i64} {
  func.func @asym_dct_kernel(%arg0: i32, %arg1: memref<8x256xf32, #tpu.memory_space<vmem>>, %arg2: memref<256x64xf32, #tpu.memory_space<vmem>>, %arg3: memref<256x256xf32, #tpu.memory_space<vmem>>, %arg4: memref<8x64xf32, #tpu.memory_space<vmem>>, %arg5: memref<8x256xf32, #tpu.memory_space<vmem>>) attributes {dimension_semantics = [#tpu.dimension_semantics<parallel>], iteration_bounds = array<i64: 1>, scalar_prefetch = 0 : i64, scratch_operands = 0 : i64, tpu.core_type = #tpu.core_type<tc>, window_params = [{transform_indices = @transform_0, window_bounds = array<i64: 8, 256>}, {pipeline_mode = #tpu.pipeline_mode<synchronous>, transform_indices = @transform_1, window_bounds = array<i64: 256, 64>}, {pipeline_mode = #tpu.pipeline_mode<synchronous>, transform_indices = @transform_2, window_bounds = array<i64: 256, 256>}, {transform_indices = @transform_3, window_bounds = array<i64: 8, 64>}, {transform_indices = @transform_4, window_bounds = array<i64: 8, 256>}]} {
    %c0 = arith.constant 0 : index
    %c0_0 = arith.constant 0 : index
    %0 = vector.load %arg1[%c0, %c0_0] : memref<8x256xf32, #tpu.memory_space<vmem>>, vector<8x256xf32>
    %c0_1 = arith.constant 0 : index
    %c0_2 = arith.constant 0 : index
    %1 = vector.load %arg2[%c0_1, %c0_2] : memref<256x64xf32, #tpu.memory_space<vmem>>, vector<256x64xf32>
    %cst = arith.constant dense<0.000000e+00> : vector<8x64xf32>
    %2 = tpu.matmul %0, %1, %cst {dimension_numbers = #tpu.dot_dimension_numbers<[1], [0], [0], [1], [0, 0, 1, 1], [], []>, precision = #tpu.contract_precision<fp32>} : vector<8x256xf32>, vector<256x64xf32>, vector<8x64xf32> -> vector<8x64xf32>
    %c0_3 = arith.constant 0 : index
    %c0_4 = arith.constant 0 : index
    %3 = vector.load %arg3[%c0_3, %c0_4] : memref<256x256xf32, #tpu.memory_space<vmem>>, vector<256x256xf32>
    %cst_5 = arith.constant dense<0.000000e+00> : vector<8x256xf32>
    %4 = tpu.matmul %0, %3, %cst_5 {dimension_numbers = #tpu.dot_dimension_numbers<[1], [0], [0], [1], [0, 0, 1, 1], [], []>, precision = #tpu.contract_precision<fp32>} : vector<8x256xf32>, vector<256x256xf32>, vector<8x256xf32> -> vector<8x256xf32>
    %c0_6 = arith.constant 0 : index
    %c0_7 = arith.constant 0 : index
    %5 = vector.load %arg4[%c0_6, %c0_7] : memref<8x64xf32, #tpu.memory_space<vmem>>, vector<8x64xf32>
    tpu.vector_store %arg4[%c0_6, %c0_7], %2 {strides = array<i32>} : memref<8x64xf32, #tpu.memory_space<vmem>>, vector<8x64xf32>,
    %c0_8 = arith.constant 0 : index
    %c0_9 = arith.constant 0 : index
    %6 = vector.load %arg5[%c0_8, %c0_9] : memref<8x256xf32, #tpu.memory_space<vmem>>, vector<8x256xf32>
    tpu.vector_store %arg5[%c0_8, %c0_9], %4 {strides = array<i32>} : memref<8x256xf32, #tpu.memory_space<vmem>>, vector<8x256xf32>,
    return
  }
  func.func @transform_0(%arg0: i32) -> (i32, i32) {
    %c0_i32 = arith.constant 0 : i32
    %c0_i32_0 = arith.constant 0 : i32
    return %arg0, %c0_i32 : i32, i32
  }
  func.func @transform_1(%arg0: i32) -> (i32, i32) {
    %c0_i32 = arith.constant 0 : i32
    %c0_i32_0 = arith.constant 0 : i32
    %c0_i32_1 = arith.constant 0 : i32
    return %c0_i32, %c0_i32_0 : i32, i32
  }
  func.func @transform_2(%arg0: i32) -> (i32, i32) {
    %c0_i32 = arith.constant 0 : i32
    %c0_i32_0 = arith.constant 0 : i32
    %c0_i32_1 = arith.constant 0 : i32
    return %c0_i32, %c0_i32_0 : i32, i32
  }
  func.func @transform_3(%arg0: i32) -> (i32, i32) {
    %c0_i32 = arith.constant 0 : i32
    %c0_i32_0 = arith.constant 0 : i32
    return %arg0, %c0_i32 : i32, i32
  }
  func.func @transform_4(%arg0: i32) -> (i32, i32) {
    %c0_i32 = arith.constant 0 : i32
    %c0_i32_0 = arith.constant 0 : i32
    return %arg0, %c0_i32 : i32, i32
  }
}

</mosaic_0001>

<llo_original>
// kernel: tpu_custom_call.1
$region0: #{tpu_custom_call.1}
  #allocation0 [shape = 'u32[]', space=smem, size = 0x4, offset = 0x4, fixed_abs, tag = 'smem constant byte address 0x4 - core index']
  #allocation1 [shape = 'u32[144,128]{1,0:T(1,128)}', space=vmem, size = 0x12000, scoped, tag = 'internal scratch']
  %s0 = inlined_call_operand.vmem [shape: f32[8,256], index: 0, kind: input, shape index: {}]
  %s1 = inlined_call_operand.vmem [shape: f32[256,64], index: 1, kind: input, shape index: {}]
  %s2 = inlined_call_operand.hbm [shape: f32[256,256], index: 2, kind: input, shape index: {}]
  %s3 = inlined_call_operand.hbm [shape: f32[8,64], index: 3, kind: output, shape index: {0}]
  %s4 = inlined_call_operand.hbm [shape: f32[8,256], index: 4, kind: output, shape index: {1}]
  %5 = xla_tuple %s3, %s4
  %s6 = sld [smem:[#allocation0]]
  $region34: #{tpu_custom_call.1} parent=0
    _
  %s8 = ssub.s32 1, %s6
  %s9 = scalar_select 0, %s8, %s6
  $region1: #{tpu_custom_call.1} parent=0
    #allocation2 [shape = 'u8[262144]{0}', space=vmem, size = 0x40000, scoped, tag = 'input window, operand 2, single buffered']
    #allocation3 [shape = 's32[1]{0}', space=sflag, size = 0x4, scoped, tag = 'scoped memory for tpu_custom_call.1']
    #allocation4 [shape = 's32[1]{0}', space=sflag, size = 0x4, scoped, tag = 'scoped memory for tpu_custom_call.1']
    #allocation5 [shape = 'u8[4096]{0}', space=vmem, size = 0x1000, scoped, tag = 'output window, operand 0, single buffered']
    #allocation6 [shape = 'u8[8192]{0}', space=vmem, size = 0x2000, scoped, tag = 'output window, operand 1, single buffered']
    #allocation7 [shape = 's32[1]{0}', space=sflag, size = 0x4, scoped, tag = 'scoped memory for tpu_custom_call.1']
    %10 = vsyncpa [#allocation3], 0
    %11 = vsyncpa [#allocation4], 0
    %12 = vsyncpa [#allocation7], 0
    // Predicated region
    $region2: #{tpu_custom_call.1} parent=1 // pred_check
      _
    $region3: #{tpu_custom_call.1} parent=1 // pred_check_branch
      %14 = sbr.rel (0) target = $region5
    $region4: #{tpu_custom_call.1} parent=1 // pred_region
      _
    $region5: #{tpu_custom_call.1} parent=1 // pred_fallthru
      _
    // Predicated region
    $region6: #{tpu_custom_call.1} parent=1 // pred_check
      _
    $region7: #{tpu_custom_call.1} parent=1 // pred_check_branch
      %16 = sbr.rel (0) target = $region9
    $region8: #{tpu_custom_call.1} parent=1 // pred_region
      _
    $region9: #{tpu_custom_call.1} parent=1 // pred_fallthru
      _
    // Predicated region
    $region10: #{tpu_custom_call.1} parent=1 // pred_check
      _
    $region11: #{tpu_custom_call.1} parent=1 // pred_check_branch
      %18 = sbr.rel (0) target = $region13
    $region12: #{tpu_custom_call.1} parent=1 // pred_region
      %s20 = ssub.s32 8192, 8192
      %21 = vsyncadd [#allocation3], %s20
      %s22 = sshll.u32 [#allocation2], 4
      %s23 = int_to_ptr.vmem [resolvable:$true] %s22
      %28 = dma.hbm_to_vmem [thread:$0]  %s2, 8192, %s23, [#allocation3], 256, 256, 16
    $region13: #{tpu_custom_call.1} parent=1 // pred_fallthru
      _
    // Predicated region
    $region14: #{tpu_custom_call.1} parent=1 // pred_check
      _
    $region15: #{tpu_custom_call.1} parent=1 // pred_check_branch
      %30 = sbr.rel (0) target = $region17
    $region16: #{tpu_custom_call.1} parent=1 // pred_region
      %31 = dma.done [#allocation3], 8192
    $region17: #{tpu_custom_call.1} parent=1 // pred_fallthru
      _
    %v32 = vld [vmem:[%s0] sm:$0xff]
    %v33 = vld [vmem:[%s0 + $0x8] sm:$0xff]
    %v34 = vld [vmem:[%s1] sm:$0xff]
    %v35 = vld [vmem:[%s1 + $0x8] sm:$0xff]
    %v36 = vld [vmem:[%s1 + $0x10] sm:$0xff]
    %v37 = vld [vmem:[%s1 + $0x18] sm:$0xff]
    %v38 = vld [vmem:[%s1 + $0x20] sm:$0xff]
    %v39 = vld [vmem:[%s1 + $0x28] sm:$0xff]
    %v40 = vld [vmem:[%s1 + $0x30] sm:$0xff]
    %v41 = vld [vmem:[%s1 + $0x38] sm:$0xff]
    %v42 = vld [vmem:[%s1 + $0x40] sm:$0xff]
    %v43 = vld [vmem:[%s1 + $0x48] sm:$0xff]
    %v44 = vld [vmem:[%s1 + $0x50] sm:$0xff]
    %v45 = vld [vmem:[%s1 + $0x58] sm:$0xff]
    %v46 = vld [vmem:[%s1 + $0x60] sm:$0xff]
    %v47 = vld [vmem:[%s1 + $0x68] sm:$0xff]
    %v48 = vld [vmem:[%s1 + $0x70] sm:$0xff]
    %v49 = vld [vmem:[%s1 + $0x78] sm:$0xff]
    %v50 = vld [vmem:[%s1 + $0x80] sm:$0xff]
    %v51 = vld [vmem:[%s1 + $0x88] sm:$0xff]
    %v52 = vld [vmem:[%s1 + $0x90] sm:$0xff]
    %v53 = vld [vmem:[%s1 + $0x98] sm:$0xff]
    %v54 = vld [vmem:[%s1 + $0xa0] sm:$0xff]
    %v55 = vld [vmem:[%s1 + $0xa8] sm:$0xff]
    %v56 = vld [vmem:[%s1 + $0xb0] sm:$0xff]
    %v57 = vld [vmem:[%s1 + $0xb8] sm:$0xff]
    %v58 = vld [vmem:[%s1 + $0xc0] sm:$0xff]
    %v59 = vld [vmem:[%s1 + $0xc8] sm:$0xff]
    %v60 = vld [vmem:[%s1 + $0xd0] sm:$0xff]
    %v61 = vld [vmem:[%s1 + $0xd8] sm:$0xff]
    %v62 = vld [vmem:[%s1 + $0xe0] sm:$0xff]
    %v63 = vld [vmem:[%s1 + $0xe8] sm:$0xff]
    %v64 = vld [vmem:[%s1 + $0xf0] sm:$0xff]
    %v65 = vld [vmem:[%s1 + $0xf8] sm:$0xff]
    %66 = vmatprep.subr.mxu0 0.0
    %v67 = vand.u32 %v49, 4294901760
    %68 = vmatpush1.msra.mxu0 %v67
    %69 = vmatprep.subr.mxu0 0.0
    %v70 = vand.u32 %v48, 4294901760
    %71 = vmatpush1.msra.mxu0 %v70
    %72 = vmatprep.subr.mxu0 0.0
    %v73 = vand.u32 %v47, 4294901760
    %74 = vmatpush1.msra.mxu0 %v73
    %75 = vmatprep.subr.mxu0 0.0
    %v76 = vand.u32 %v46, 4294901760
    %77 = vmatpush1.msra.mxu0 %v76
    %78 = vmatprep.subr.mxu0 0.0
    %v79 = vand.u32 %v45, 4294901760
    %80 = vmatpush1.msra.mxu0 %v79
    %81 = vmatprep.subr.mxu0 0.0
    %v82 = vand.u32 %v44, 4294901760
    %83 = vmatpush1.msra.mxu0 %v82
    %84 = vmatprep.subr.mxu0 0.0
    %v85 = vand.u32 %v43, 4294901760
    %86 = vmatpush1.msra.mxu0 %v85
    %87 = vmatprep.subr.mxu0 0.0
    %v88 = vand.u32 %v42, 4294901760
    %89 = vmatpush1.msra.mxu0 %v88
    %90 = vmatprep.subr.mxu0 0.0
    %v91 = vand.u32 %v41, 4294901760
    %92 = vmatpush1.msra.mxu0 %v91
    %93 = vmatprep.subr.mxu0 0.0
    %v94 = vand.u32 %v40, 4294901760
    %95 = vmatpush1.msra.mxu0 %v94
    %96 = vmatprep.subr.mxu0 0.0
    %v97 = vand.u32 %v39, 4294901760
    %98 = vmatpush1.msra.mxu0 %v97
    %99 = vmatprep.subr.mxu0 0.0
    %v100 = vand.u32 %v38, 4294901760
    %101 = vmatpush1.msra.mxu0 %v100
    %102 = vmatprep.subr.mxu0 0.0
    %v103 = vand.u32 %v37, 4294901760
    %104 = vmatpush1.msra.mxu0 %v103
    %105 = vmatprep.subr.mxu0 0.0
    %v106 = vand.u32 %v36, 4294901760
    %107 = vmatpush1.msra.mxu0 %v106
    %108 = vmatprep.subr.mxu0 0.0
    %v109 = vand.u32 %v35, 4294901760
    %110 = vmatpush1.msra.mxu0 %v109
    %111 = vmatprep.subr.mxu0 0.0
    %v112 = vand.u32 %v34, 4294901760
    %113 = vmatpush1.msra.mxu0 %v112
    %114 = vmatprep.subr.mxu0 0.0
    %v115 = vand.u32 %v65, 4294901760
    %116 = vmatpush2.msra.mxu0 %v115
    %117 = vmatprep.subr.mxu0 0.0
    %v118 = vand.u32 %v64, 4294901760
    %119 = vmatpush2.msra.mxu0 %v118
    %120 = vmatprep.subr.mxu0 0.0
    %v121 = vand.u32 %v63, 4294901760
    %122 = vmatpush2.msra.mxu0 %v121
    %123 = vmatprep.subr.mxu0 0.0
    %v124 = vand.u32 %v62, 4294901760
    %125 = vmatpush2.msra.mxu0 %v124
    %126 = vmatprep.subr.mxu0 0.0
    %v127 = vand.u32 %v61, 4294901760
    %128 = vmatpush2.msra.mxu0 %v127
    %129 = vmatprep.subr.mxu0 0.0
    %v130 = vand.u32 %v60, 4294901760
    %131 = vmatpush2.msra.mxu0 %v130
    %132 = vmatprep.subr.mxu0 0.0
    %v133 = vand.u32 %v59, 4294901760
    %134 = vmatpush2.msra.mxu0 %v133
    %135 = vmatprep.subr.mxu0 0.0
    %v136 = vand.u32 %v58, 4294901760
    %137 = vmatpush2.msra.mxu0 %v136
    %138 = vmatprep.subr.mxu0 0.0
    %v139 = vand.u32 %v57, 4294901760
    %140 = vmatpush2.msra.mxu0 %v139
    %141 = vmatprep.subr.mxu0 0.0
    %v142 = vand.u32 %v56, 4294901760
    %143 = vmatpush2.msra.mxu0 %v142
    %144 = vmatprep.subr.mxu0 0.0
    %v145 = vand.u32 %v55, 4294901760
    %146 = vmatpush2.msra.mxu0 %v145
    %147 = vmatprep.subr.mxu0 0.0
    %v148 = vand.u32 %v54, 4294901760
    %149 = vmatpush2.msra.mxu0 %v148
    %150 = vmatprep.subr.mxu0 0.0
    %v151 = vand.u32 %v53, 4294901760
    %152 = vmatpush2.msra.mxu0 %v151
    %153 = vmatprep.subr.mxu0 0.0
    %v154 = vand.u32 %v52, 4294901760
    %155 = vmatpush2.msra.mxu0 %v154
    %156 = vmatprep.subr.mxu0 0.0
    %v157 = vand.u32 %v51, 4294901760
    %158 = vmatpush2.msra.mxu0 %v157
    %159 = vmatprep.subr.mxu0 0.0
    %v160 = vand.u32 %v50, 4294901760
    %161 = vmatpush2.msra.mxu0 %v160
    %v162 = vand.u32 %v33, 4294901760
    %v163 = vsub.f32 %v33, %v162
    %v164 = vand.u32 %v163, 4294901760
    %v165 = vsub.f32 %v163, %v164
    %v166 = vand.u32 %v165, 4294901760
    %167 = vmatprep.mubr.f32.mxu0 %v166
    %v168 = vand.u32 %v32, 4294901760
    %v169 = vsub.f32 %v32, %v168
    %v170 = vand.u32 %v169, 4294901760
    %v171 = vsub.f32 %v169, %v170
    %v172 = vand.u32 %v171, 4294901760
    %173 = vmatmul.mubr.f32.gmra.mxu0 %v172
    %v174 = vpop.f32.mrf.mxu0
    %v175 = vadd.f32 0.0, %v174
    %v176 = vpop.f32.mrf.mxu0
    %177 = vdwg.mxu0
    %178 = vmatprep.subr.mxu0 0.0
    %v179 = vand.u32 %v49, 4294901760
    %v180 = vsub.f32 %v49, %v179
    %v181 = vand.u32 %v180, 4294901760
    %v182 = vsub.f32 %v180, %v181
    %v183 = vand.u32 %v182, 4294901760
    %184 = vmatpush1.msra.mxu0 %v183
    %185 = vmatprep.subr.mxu0 0.0
    %v186 = vand.u32 %v48, 4294901760
    %v187 = vsub.f32 %v48, %v186
    %v188 = vand.u32 %v187, 4294901760
    %v189 = vsub.f32 %v187, %v188
    %v190 = vand.u32 %v189, 4294901760
    %191 = vmatpush1.msra.mxu0 %v190
    %192 = vmatprep.subr.mxu0 0.0
    %v193 = vand.u32 %v47, 4294901760
    %v194 = vsub.f32 %v47, %v193
    %v195 = vand.u32 %v194, 4294901760
    %v196 = vsub.f32 %v194, %v195
    %v197 = vand.u32 %v196, 4294901760
    %198 = vmatpush1.msra.mxu0 %v197
    %199 = vmatprep.subr.mxu0 0.0
    %v200 = vand.u32 %v46, 4294901760
    %v201 = vsub.f32 %v46, %v200
    %v202 = vand.u32 %v201, 4294901760
    %v203 = vsub.f32 %v201, %v202
    %v204 = vand.u32 %v203, 4294901760
    %205 = vmatpush1.msra.mxu0 %v204
    %206 = vmatprep.subr.mxu0 0.0
    %v207 = vand.u32 %v45, 4294901760
    %v208 = vsub.f32 %v45, %v207
    %v209 = vand.u32 %v208, 4294901760
    %v210 = vsub.f32 %v208, %v209
    %v211 = vand.u32 %v210, 4294901760
    %212 = vmatpush1.msra.mxu0 %v211
    %213 = vmatprep.subr.mxu0 0.0
    %v214 = vand.u32 %v44, 4294901760
    %v215 = vsub.f32 %v44, %v214
    %v216 = vand.u32 %v215, 4294901760
    %v217 = vsub.f32 %v215, %v216
    %v218 = vand.u32 %v217, 4294901760
    %219 = vmatpush1.msra.mxu0 %v218
    %220 = vmatprep.subr.mxu0 0.0
    %v221 = vand.u32 %v43, 4294901760
    %v222 = vsub.f32 %v43, %v221
    %v223 = vand.u32 %v222, 4294901760
    %v224 = vsub.f32 %v222, %v223
    %v225 = vand.u32 %v224, 4294901760
    %226 = vmatpush1.msra.mxu0 %v225
    %227 = vmatprep.subr.mxu0 0.0
    %v228 = vand.u32 %v42, 4294901760
    %v229 = vsub.f32 %v42, %v228
    %v230 = vand.u32 %v229, 4294901760
    %v231 = vsub.f32 %v229, %v230
    %v232 = vand.u32 %v231, 4294901760
    %233 = vmatpush1.msra.mxu0 %v232
    %234 = vmatprep.subr.mxu0 0.0
    %v235 = vand.u32 %v41, 4294901760
    %v236 = vsub.f32 %v41, %v235
    %v237 = vand.u32 %v236, 4294901760
    %v238 = vsub.f32 %v236, %v237
    %v239 = vand.u32 %v238, 4294901760
    %240 = vmatpush1.msra.mxu0 %v239
    %241 = vmatprep.subr.mxu0 0.0
    %v242 = vand.u32 %v40, 4294901760
    %v243 = vsub.f32 %v40, %v242
    %v244 = vand.u32 %v243, 4294901760
    %v245 = vsub.f32 %v243, %v244
    %v246 = vand.u32 %v245, 4294901760
    %247 = vmatpush1.msra.mxu0 %v246
    %248 = vmatprep.subr.mxu0 0.0
    %v249 = vand.u32 %v39, 4294901760
    %v250 = vsub.f32 %v39, %v249
    %v251 = vand.u32 %v250, 4294901760
    %v252 = vsub.f32 %v250, %v251
    %v253 = vand.u32 %v252, 4294901760
    %254 = vmatpush1.msra.mxu0 %v253
    %255 = vmatprep.subr.mxu0 0.0
    %v256 = vand.u32 %v38, 4294901760
    %v257 = vsub.f32 %v38, %v256
    %v258 = vand.u32 %v257, 4294901760
    %v259 = vsub.f32 %v257, %v258
    %v260 = vand.u32 %v259, 4294901760
    %261 = vmatpush1.msra.mxu0 %v260
    %262 = vmatprep.subr.mxu0 0.0
    %v263 = vand.u32 %v37, 4294901760
    %v264 = vsub.f32 %v37, %v263
    %v265 = vand.u32 %v264, 4294901760
    %v266 = vsub.f32 %v264, %v265
    %v267 = vand.u32 %v266, 4294901760
    %268 = vmatpush1.msra.mxu0 %v267
    %269 = vmatprep.subr.mxu0 0.0
    %v270 = vand.u32 %v36, 4294901760
    %v271 = vsub.f32 %v36, %v270
    %v272 = vand.u32 %v271, 4294901760
    %v273 = vsub.f32 %v271, %v272
    %v274 = vand.u32 %v273, 4294901760
    %275 = vmatpush1.msra.mxu0 %v274
    %276 = vmatprep.subr.mxu0 0.0
    %v277 = vand.u32 %v35, 4294901760
    %v278 = vsub.f32 %v35, %v277
    %v279 = vand.u32 %v278, 4294901760
    %v280 = vsub.f32 %v278, %v279
    %v281 = vand.u32 %v280, 4294901760
    %282 = vmatpush1.msra.mxu0 %v281
    %283 = vmatprep.subr.mxu0 0.0
    %v284 = vand.u32 %v34, 4294901760
    %v285 = vsub.f32 %v34, %v284
    %v286 = vand.u32 %v285, 4294901760
    %v287 = vsub.f32 %v285, %v286
    %v288 = vand.u32 %v287, 4294901760
    %289 = vmatpush1.msra.mxu0 %v288
    %290 = vmatprep.subr.mxu0 0.0
    %v291 = vand.u32 %v65, 4294901760
    %v292 = vsub.f32 %v65, %v291
    %v293 = vand.u32 %v292, 4294901760
    %v294 = vsub.f32 %v292, %v293
    %v295 = vand.u32 %v294, 4294901760
    %296 = vmatpush2.msra.mxu0 %v295
    %297 = vmatprep.subr.mxu0 0.0
    %v298 = vand.u32 %v64, 4294901760
    %v299 = vsub.f32 %v64, %v298
    %v300 = vand.u32 %v299, 4294901760
    %v301 = vsub.f32 %v299, %v300
    %v302 = vand.u32 %v301, 4294901760
    %303 = vmatpush2.msra.mxu0 %v302
    %304 = vmatprep.subr.mxu0 0.0
    %v305 = vand.u32 %v63, 4294901760
    %v306 = vsub.f32 %v63, %v305
    %v307 = vand.u32 %v306, 4294901760
    %v308 = vsub.f32 %v306, %v307
    %v309 = vand.u32 %v308, 4294901760
    %310 = vmatpush2.msra.mxu0 %v309
    %311 = vmatprep.subr.mxu0 0.0
    %v312 = vand.u32 %v62, 4294901760
    %v313 = vsub.f32 %v62, %v312
    %v314 = vand.u32 %v313, 4294901760
    %v315 = vsub.f32 %v313, %v314
    %v316 = vand.u32 %v315, 4294901760
    %317 = vmatpush2.msra.mxu0 %v316
    %318 = vmatprep.subr.mxu0 0.0
    %v319 = vand.u32 %v61, 4294901760
    %v320 = vsub.f32 %v61, %v319
    %v321 = vand.u32 %v320, 4294901760
    %v322 = vsub.f32 %v320, %v321
    %v323 = vand.u32 %v322, 4294901760
    %324 = vmatpush2.msra.mxu0 %v323
    %325 = vmatprep.subr.mxu0 0.0
    %v326 = vand.u32 %v60, 4294901760
    %v327 = vsub.f32 %v60, %v326
    %v328 = vand.u32 %v327, 4294901760
    %v329 = vsub.f32 %v327, %v328
    %v330 = vand.u32 %v329, 4294901760
    %331 = vmatpush2.msra.mxu0 %v330
    %332 = vmatprep.subr.mxu0 0.0
    %v333 = vand.u32 %v59, 4294901760
    %v334 = vsub.f32 %v59, %v333
    %v335 = vand.u32 %v334, 4294901760
    %v336 = vsub.f32 %v334, %v335
    %v337 = vand.u32 %v336, 4294901760
    %338 = vmatpush2.msra.mxu0 %v337
    %339 = vmatprep.subr.mxu0 0.0
    %v340 = vand.u32 %v58, 4294901760
    %v341 = vsub.f32 %v58, %v340
    %v342 = vand.u32 %v341, 4294901760
    %v343 = vsub.f32 %v341, %v342
    %v344 = vand.u32 %v343, 4294901760
    %345 = vmatpush2.msra.mxu0 %v344
    %346 = vmatprep.subr.mxu0 0.0
    %v347 = vand.u32 %v57, 4294901760
    %v348 = vsub.f32 %v57, %v347
    %v349 = vand.u32 %v348, 4294901760
    %v350 = vsub.f32 %v348, %v349
    %v351 = vand.u32 %v350, 4294901760
    %352 = vmatpush2.msra.mxu0 %v351
    %353 = vmatprep.subr.mxu0 0.0
    %v354 = vand.u32 %v56, 4294901760
    %v355 = vsub.f32 %v56, %v354
    %v356 = vand.u32 %v355, 4294901760
    %v357 = vsub.f32 %v355, %v356
    %v358 = vand.u32 %v357, 4294901760
    %359 = vmatpush2.msra.mxu0 %v358
    %360 = vmatprep.subr.mxu0 0.0
    %v361 = vand.u32 %v55, 4294901760
    %v362 = vsub.f32 %v55, %v361
    %v363 = vand.u32 %v362, 4294901760
    %v364 = vsub.f32 %v362, %v363
    %v365 = vand.u32 %v364, 4294901760
    %366 = vmatpush2.msra.mxu0 %v365
    %367 = vmatprep.subr.mxu0 0.0
    %v368 = vand.u32 %v54, 4294901760
    %v369 = vsub.f32 %v54, %v368
    %v370 = vand.u32 %v369, 4294901760
    %v371 = vsub.f32 %v369, %v370
    %v372 = vand.u32 %v371, 4294901760
    %373 = vmatpush2.msra.mxu0 %v372
    %374 = vmatprep.subr.mxu0 0.0
    %v375 = vand.u32 %v53, 4294901760
    %v376 = vsub.f32 %v53, %v375
    %v377 = vand.u32 %v376, 4294901760
    %v378 = vsub.f32 %v376, %v377
    %v379 = vand.u32 %v378, 4294901760
    %380 = vmatpush2.msra.mxu0 %v379
    %381 = vmatprep.subr.mxu0 0.0
    %v382 = vand.u32 %v52, 4294901760
    %v383 = vsub.f32 %v52, %v382
    %v384 = vand.u32 %v383, 4294901760
    %v385 = vsub.f32 %v383, %v384
    %v386 = vand.u32 %v385, 4294901760
    %387 = vmatpush2.msra.mxu0 %v386
    %388 = vmatprep.subr.mxu0 0.0
    %v389 = vand.u32 %v51, 4294901760
    %v390 = vsub.f32 %v51, %v389
    %v391 = vand.u32 %v390, 4294901760
    %v392 = vsub.f32 %v390, %v391
    %v393 = vand.u32 %v392, 4294901760
    %394 = vmatpush2.msra.mxu0 %v393
    %395 = vmatprep.subr.mxu0 0.0
    %v396 = vand.u32 %v50, 4294901760
    %v397 = vsub.f32 %v50, %v396
    %v398 = vand.u32 %v397, 4294901760
    %v399 = vsub.f32 %v397, %v398
    %v400 = vand.u32 %v399, 4294901760
    %401 = vmatpush2.msra.mxu0 %v400
    %v402 = vand.u32 %v33, 4294901760
    %403 = vmatprep.mubr.f32.mxu0 %v402
    %v404 = vand.u32 %v32, 4294901760
    %405 = vmatmul.mubr.f32.gmra.mxu0 %v404
    %v406 = vpop.f32.mrf.mxu0
    %v407 = vadd.f32 %v175, %v406
    %v408 = vpop.f32.mrf.mxu0
    %409 = vdwg.mxu0
    %410 = vmatprep.subr.mxu0 0.0
    %v411 = vand.u32 %v49, 4294901760
    %v412 = vsub.f32 %v49, %v411
    %413 = vmatpush1.msra.mxu0 %v412
    %414 = vmatprep.subr.mxu0 0.0
    %v415 = vand.u32 %v48, 4294901760
    %v416 = vsub.f32 %v48, %v415
    %417 = vmatpush1.msra.mxu0 %v416
    %418 = vmatprep.subr.mxu0 0.0
    %v419 = vand.u32 %v47, 4294901760
    %v420 = vsub.f32 %v47, %v419
    %421 = vmatpush1.msra.mxu0 %v420
    %422 = vmatprep.subr.mxu0 0.0
    %v423 = vand.u32 %v46, 4294901760
    %v424 = vsub.f32 %v46, %v423
    %425 = vmatpush1.msra.mxu0 %v424
    %426 = vmatprep.subr.mxu0 0.0
    %v427 = vand.u32 %v45, 4294901760
    %v428 = vsub.f32 %v45, %v427
    %429 = vmatpush1.msra.mxu0 %v428
    %430 = vmatprep.subr.mxu0 0.0
    %v431 = vand.u32 %v44, 4294901760
    %v432 = vsub.f32 %v44, %v431
    %433 = vmatpush1.msra.mxu0 %v432
    %434 = vmatprep.subr.mxu0 0.0
    %v435 = vand.u32 %v43, 4294901760
    %v436 = vsub.f32 %v43, %v435
    %437 = vmatpush1.msra.mxu0 %v436
    %438 = vmatprep.subr.mxu0 0.0
    %v439 = vand.u32 %v42, 4294901760
    %v440 = vsub.f32 %v42, %v439
    %441 = vmatpush1.msra.mxu0 %v440
    %442 = vmatprep.subr.mxu0 0.0
    %v443 = vand.u32 %v41, 4294901760
    %v444 = vsub.f32 %v41, %v443
    %445 = vmatpush1.msra.mxu0 %v444
    %446 = vmatprep.subr.mxu0 0.0
    %v447 = vand.u32 %v40, 4294901760
    %v448 = vsub.f32 %v40, %v447
    %449 = vmatpush1.msra.mxu0 %v448
    %450 = vmatprep.subr.mxu0 0.0
    %v451 = vand.u32 %v39, 4294901760
    %v452 = vsub.f32 %v39, %v451
    %453 = vmatpush1.msra.mxu0 %v452
    %454 = vmatprep.subr.mxu0 0.0
    %v455 = vand.u32 %v38, 4294901760
    %v456 = vsub.f32 %v38, %v455
    %457 = vmatpush1.msra.mxu0 %v456
    %458 = vmatprep.subr.mxu0 0.0
    %v459 = vand.u32 %v37, 4294901760
    %v460 = vsub.f32 %v37, %v459
    %461 = vmatpush1.msra.mxu0 %v460
    %462 = vmatprep.subr.mxu0 0.0
    %v463 = vand.u32 %v36, 4294901760
    %v464 = vsub.f32 %v36, %v463
    %465 = vmatpush1.msra.mxu0 %v464
    %466 = vmatprep.subr.mxu0 0.0
    %v467 = vand.u32 %v35, 4294901760
    %v468 = vsub.f32 %v35, %v467
    %469 = vmatpush1.msra.mxu0 %v468
    %470 = vmatprep.subr.mxu0 0.0
    %v471 = vand.u32 %v34, 4294901760
    %v472 = vsub.f32 %v34, %v471
    %473 = vmatpush1.msra.mxu0 %v472
    %474 = vmatprep.subr.mxu0 0.0
    %v475 = vand.u32 %v65, 4294901760
    %v476 = vsub.f32 %v65, %v475
    %477 = vmatpush2.msra.mxu0 %v476
    %478 = vmatprep.subr.mxu0 0.0
    %v479 = vand.u32 %v64, 4294901760
    %v480 = vsub.f32 %v64, %v479
    %481 = vmatpush2.msra.mxu0 %v480
    %482 = vmatprep.subr.mxu0 0.0
    %v483 = vand.u32 %v63, 4294901760
    %v484 = vsub.f32 %v63, %v483
    %485 = vmatpush2.msra.mxu0 %v484
    %486 = vmatprep.subr.mxu0 0.0
    %v487 = vand.u32 %v62, 4294901760
    %v488 = vsub.f32 %v62, %v487
    %489 = vmatpush2.msra.mxu0 %v488
    %490 = vmatprep.subr.mxu0 0.0
    %v491 = vand.u32 %v61, 4294901760
    %v492 = vsub.f32 %v61, %v491
    %493 = vmatpush2.msra.mxu0 %v492
    %494 = vmatprep.subr.mxu0 0.0
    %v495 = vand.u32 %v60, 4294901760
    %v496 = vsub.f32 %v60, %v495
    %497 = vmatpush2.msra.mxu0 %v496
    %498 = vmatprep.subr.mxu0 0.0
    %v499 = vand.u32 %v59, 4294901760
    %v500 = vsub.f32 %v59, %v499
    %501 = vmatpush2.msra.mxu0 %v500
    %502 = vmatprep.subr.mxu0 0.0
    %v503 = vand.u32 %v58, 4294901760
    %v504 = vsub.f32 %v58, %v503
    %505 = vmatpush2.msra.mxu0 %v504
    %506 = vmatprep.subr.mxu0 0.0
    %v507 = vand.u32 %v57, 4294901760
    %v508 = vsub.f32 %v57, %v507
    %509 = vmatpush2.msra.mxu0 %v508
    %510 = vmatprep.subr.mxu0 0.0
    %v511 = vand.u32 %v56, 4294901760
    %v512 = vsub.f32 %v56, %v511
    %513 = vmatpush2.msra.mxu0 %v512
    %514 = vmatprep.subr.mxu0 0.0
    %v515 = vand.u32 %v55, 4294901760
    %v516 = vsub.f32 %v55, %v515
    %517 = vmatpush2.msra.mxu0 %v516
    %518 = vmatprep.subr.mxu0 0.0
    %v519 = vand.u32 %v54, 4294901760
    %v520 = vsub.f32 %v54, %v519
    %521 = vmatpush2.msra.mxu0 %v520
    %522 = vmatprep.subr.mxu0 0.0
    %v523 = vand.u32 %v53, 4294901760
    %v524 = vsub.f32 %v53, %v523
    %525 = vmatpush2.msra.mxu0 %v524
    %526 = vmatprep.subr.mxu0 0.0
    %v527 = vand.u32 %v52, 4294901760
    %v528 = vsub.f32 %v52, %v527
    %529 = vmatpush2.msra.mxu0 %v528
    %530 = vmatprep.subr.mxu0 0.0
    %v531 = vand.u32 %v51, 4294901760
    %v532 = vsub.f32 %v51, %v531
    %533 = vmatpush2.msra.mxu0 %v532
    %534 = vmatprep.subr.mxu0 0.0
    %v535 = vand.u32 %v50, 4294901760
    %v536 = vsub.f32 %v50, %v535
    %537 = vmatpush2.msra.mxu0 %v536
    %v538 = vand.u32 %v33, 4294901760
    %v539 = vsub.f32 %v33, %v538
    %540 = vmatprep.mubr.f32.mxu0 %v539
    %v541 = vand.u32 %v32, 4294901760
    %v542 = vsub.f32 %v32, %v541
    %543 = vmatmul.mubr.f32.gmra.mxu0 %v542
    %v544 = vpop.f32.mrf.mxu0
    %v545 = vadd.f32 %v407, %v544
    %v546 = vpop.f32.mrf.mxu0
    %547 = vdwg.mxu0
    %548 = vmatprep.subr.mxu0 0.0
    %v549 = vand.u32 %v49, 4294901760
    %550 = vmatpush1.msra.mxu0 %v549
    %551 = vmatprep.subr.mxu0 0.0
    %v552 = vand.u32 %v48, 4294901760
    %553 = vmatpush1.msra.mxu0 %v552
    %554 = vmatprep.subr.mxu0 0.0
    %v555 = vand.u32 %v47, 4294901760
    %556 = vmatpush1.msra.mxu0 %v555
    %557 = vmatprep.subr.mxu0 0.0
    %v558 = vand.u32 %v46, 4294901760
    %559 = vmatpush1.msra.mxu0 %v558
    %560 = vmatprep.subr.mxu0 0.0
    %v561 = vand.u32 %v45, 4294901760
    %562 = vmatpush1.msra.mxu0 %v561
    %563 = vmatprep.subr.mxu0 0.0
    %v564 = vand.u32 %v44, 4294901760
    %565 = vmatpush1.msra.mxu0 %v564
    %566 = vmatprep.subr.mxu0 0.0
    %v567 = vand.u32 %v43, 4294901760
    %568 = vmatpush1.msra.mxu0 %v567
    %569 = vmatprep.subr.mxu0 0.0
    %v570 = vand.u32 %v42, 4294901760
    %571 = vmatpush1.msra.mxu0 %v570
    %572 = vmatprep.subr.mxu0 0.0
    %v573 = vand.u32 %v41, 4294901760
    %574 = vmatpush1.msra.mxu0 %v573
    %575 = vmatprep.subr.mxu0 0.0
    %v576 = vand.u32 %v40, 4294901760
    %577 = vmatpush1.msra.mxu0 %v576
    %578 = vmatprep.subr.mxu0 0.0
    %v579 = vand.u32 %v39, 4294901760
    %580 = vmatpush1.msra.mxu0 %v579
    %581 = vmatprep.subr.mxu0 0.0
    %v582 = vand.u32 %v38, 4294901760
    %583 = vmatpush1.msra.mxu0 %v582
    %584 = vmatprep.subr.mxu0 0.0
    %v585 = vand.u32 %v37, 4294901760
    %586 = vmatpush1.msra.mxu0 %v585
    %587 = vmatprep.subr.mxu0 0.0
    %v588 = vand.u32 %v36, 4294901760
    %589 = vmatpush1.msra.mxu0 %v588
    %590 = vmatprep.subr.mxu0 0.0
    %v591 = vand.u32 %v35, 4294901760
    %592 = vmatpush1.msra.mxu0 %v591
    %593 = vmatprep.subr.mxu0 0.0
    %v594 = vand.u32 %v34, 4294901760
    %595 = vmatpush1.msra.mxu0 %v594
    %596 = vmatprep.subr.mxu0 0.0
    %v597 = vand.u32 %v65, 4294901760
    %598 = vmatpush2.msra.mxu0 %v597
    %599 = vmatprep.subr.mxu0 0.0
    %v600 = vand.u32 %v64, 4294901760
    %601 = vmatpush2.msra.mxu0 %v600
    %602 = vmatprep.subr.mxu0 0.0
    %v603 = vand.u32 %v63, 4294901760
    %604 = vmatpush2.msra.mxu0 %v603
    %605 = vmatprep.subr.mxu0 0.0
    %v606 = vand.u32 %v62, 4294901760
    %607 = vmatpush2.msra.mxu0 %v606
    %608 = vmatprep.subr.mxu0 0.0
    %v609 = vand.u32 %v61, 4294901760
    %610 = vmatpush2.msra.mxu0 %v609
    %611 = vmatprep.subr.mxu0 0.0
    %v612 = vand.u32 %v60, 4294901760
    %613 = vmatpush2.msra.mxu0 %v612
    %614 = vmatprep.subr.mxu0 0.0
    %v615 = vand.u32 %v59, 4294901760
    %616 = vmatpush2.msra.mxu0 %v615
    %617 = vmatprep.subr.mxu0 0.0
    %v618 = vand.u32 %v58, 4294901760
    %619 = vmatpush2.msra.mxu0 %v618
    %620 = vmatprep.subr.mxu0 0.0
    %v621 = vand.u32 %v57, 4294901760
    %622 = vmatpush2.msra.mxu0 %v621
    %623 = vmatprep.subr.mxu0 0.0
    %v624 = vand.u32 %v56, 4294901760
    %625 = vmatpush2.msra.mxu0 %v624
    %626 = vmatprep.subr.mxu0 0.0
    %v627 = vand.u32 %v55, 4294901760
    %628 = vmatpush2.msra.mxu0 %v627
    %629 = vmatprep.subr.mxu0 0.0
    %v630 = vand.u32 %v54, 4294901760
    %631 = vmatpush2.msra.mxu0 %v630
    %632 = vmatprep.subr.mxu0 0.0
    %v633 = vand.u32 %v53, 4294901760
    %634 = vmatpush2.msra.mxu0 %v633
    %635 = vmatprep.subr.mxu0 0.0
    %v636 = vand.u32 %v52, 4294901760
    %637 = vmatpush2.msra.mxu0 %v636
    %638 = vmatprep.subr.mxu0 0.0
    %v639 = vand.u32 %v51, 4294901760
    %640 = vmatpush2.msra.mxu0 %v639
    %641 = vmatprep.subr.mxu0 0.0
    %v642 = vand.u32 %v50, 4294901760
    %643 = vmatpush2.msra.mxu0 %v642
    %v644 = vand.u32 %v33, 4294901760
    %v645 = vsub.f32 %v33, %v644
    %v646 = vand.u32 %v645, 4294901760
    %647 = vmatprep.mubr.f32.mxu0 %v646
    %v648 = vand.u32 %v32, 4294901760
    %v649 = vsub.f32 %v32, %v648
    %v650 = vand.u32 %v649, 4294901760
    %651 = vmatmul.mubr.f32.gmra.mxu0 %v650
    %v652 = vpop.f32.mrf.mxu0
    %v653 = vadd.f32 %v545, %v652
    %v654 = vpop.f32.mrf.mxu0
    %655 = vdwg.mxu0
    %656 = vmatprep.subr.mxu0 0.0
    %v657 = vand.u32 %v49, 4294901760
    %v658 = vsub.f32 %v49, %v657
    %v659 = vand.u32 %v658, 4294901760
    %660 = vmatpush1.msra.mxu0 %v659
    %661 = vmatprep.subr.mxu0 0.0
    %v662 = vand.u32 %v48, 4294901760
    %v663 = vsub.f32 %v48, %v662
    %v664 = vand.u32 %v663, 4294901760
    %665 = vmatpush1.msra.mxu0 %v664
    %666 = vmatprep.subr.mxu0 0.0
    %v667 = vand.u32 %v47, 4294901760
    %v668 = vsub.f32 %v47, %v667
    %v669 = vand.u32 %v668, 4294901760
    %670 = vmatpush1.msra.mxu0 %v669
    %671 = vmatprep.subr.mxu0 0.0
    %v672 = vand.u32 %v46, 4294901760
    %v673 = vsub.f32 %v46, %v672
    %v674 = vand.u32 %v673, 4294901760
    %675 = vmatpush1.msra.mxu0 %v674
    %676 = vmatprep.subr.mxu0 0.0
    %v677 = vand.u32 %v45, 4294901760
    %v678 = vsub.f32 %v45, %v677
    %v679 = vand.u32 %v678, 4294901760
    %680 = vmatpush1.msra.mxu0 %v679
    %681 = vmatprep.subr.mxu0 0.0
    %v682 = vand.u32 %v44, 4294901760
    %v683 = vsub.f32 %v44, %v682
    %v684 = vand.u32 %v683, 4294901760
    %685 = vmatpush1.msra.mxu0 %v684
    %686 = vmatprep.subr.mxu0 0.0
    %v687 = vand.u32 %v43, 4294901760
    %v688 = vsub.f32 %v43, %v687
    %v689 = vand.u32 %v688, 4294901760
    %690 = vmatpush1.msra.mxu0 %v689
    %691 = vmatprep.subr.mxu0 0.0
    %v692 = vand.u32 %v42, 4294901760
    %v693 = vsub.f32 %v42, %v692
    %v694 = vand.u32 %v693, 4294901760
    %695 = vmatpush1.msra.mxu0 %v694
    %696 = vmatprep.subr.mxu0 0.0
    %v697 = vand.u32 %v41, 4294901760
    %v698 = vsub.f32 %v41, %v697
    %v699 = vand.u32 %v698, 4294901760
    %700 = vmatpush1.msra.mxu0 %v699
    %701 = vmatprep.subr.mxu0 0.0
    %v702 = vand.u32 %v40, 4294901760
    %v703 = vsub.f32 %v40, %v702
    %v704 = vand.u32 %v703, 4294901760
    %705 = vmatpush1.msra.mxu0 %v704
    %706 = vmatprep.subr.mxu0 0.0
    %v707 = vand.u32 %v39, 4294901760
    %v708 = vsub.f32 %v39, %v707
    %v709 = vand.u32 %v708, 4294901760
    %710 = vmatpush1.msra.mxu0 %v709
    %711 = vmatprep.subr.mxu0 0.0
    %v712 = vand.u32 %v38, 4294901760
    %v713 = vsub.f32 %v38, %v712
    %v714 = vand.u32 %v713, 4294901760
    %715 = vmatpush1.msra.mxu0 %v714
    %716 = vmatprep.subr.mxu0 0.0
    %v717 = vand.u32 %v37, 4294901760
    %v718 = vsub.f32 %v37, %v717
    %v719 = vand.u32 %v718, 4294901760
    %720 = vmatpush1.msra.mxu0 %v719
    %721 = vmatprep.subr.mxu0 0.0
    %v722 = vand.u32 %v36, 4294901760
    %v723 = vsub.f32 %v36, %v722
    %v724 = vand.u32 %v723, 4294901760
    %725 = vmatpush1.msra.mxu0 %v724
    %726 = vmatprep.subr.mxu0 0.0
    %v727 = vand.u32 %v35, 4294901760
    %v728 = vsub.f32 %v35, %v727
    %v729 = vand.u32 %v728, 4294901760
    %730 = vmatpush1.msra.mxu0 %v729
    %731 = vmatprep.subr.mxu0 0.0
    %v732 = vand.u32 %v34, 4294901760
    %v733 = vsub.f32 %v34, %v732
    %v734 = vand.u32 %v733, 4294901760
    %735 = vmatpush1.msra.mxu0 %v734
    %736 = vmatprep.subr.mxu0 0.0
    %v737 = vand.u32 %v65, 4294901760
    %v738 = vsub.f32 %v65, %v737
    %v739 = vand.u32 %v738, 4294901760
    %740 = vmatpush2.msra.mxu0 %v739
    %741 = vmatprep.subr.mxu0 0.0
    %v742 = vand.u32 %v64, 4294901760
    %v743 = vsub.f32 %v64, %v742
    %v744 = vand.u32 %v743, 4294901760
    %745 = vmatpush2.msra.mxu0 %v744
    %746 = vmatprep.subr.mxu0 0.0
    %v747 = vand.u32 %v63, 4294901760
    %v748 = vsub.f32 %v63, %v747
    %v749 = vand.u32 %v748, 4294901760
    %750 = vmatpush2.msra.mxu0 %v749
    %751 = vmatprep.subr.mxu0 0.0
    %v752 = vand.u32 %v62, 4294901760
    %v753 = vsub.f32 %v62, %v752
    %v754 = vand.u32 %v753, 4294901760
    %755 = vmatpush2.msra.mxu0 %v754
    %756 = vmatprep.subr.mxu0 0.0
    %v757 = vand.u32 %v61, 4294901760
    %v758 = vsub.f32 %v61, %v757
    %v759 = vand.u32 %v758, 4294901760
    %760 = vmatpush2.msra.mxu0 %v759
    %761 = vmatprep.subr.mxu0 0.0
    %v762 = vand.u32 %v60, 4294901760
    %v763 = vsub.f32 %v60, %v762
    %v764 = vand.u32 %v763, 4294901760
    %765 = vmatpush2.msra.mxu0 %v764
    %766 = vmatprep.subr.mxu0 0.0
    %v767 = vand.u32 %v59, 4294901760
    %v768 = vsub.f32 %v59, %v767
    %v769 = vand.u32 %v768, 4294901760
    %770 = vmatpush2.msra.mxu0 %v769
    %771 = vmatprep.subr.mxu0 0.0
    %v772 = vand.u32 %v58, 4294901760
    %v773 = vsub.f32 %v58, %v772
    %v774 = vand.u32 %v773, 4294901760
    %775 = vmatpush2.msra.mxu0 %v774
    %776 = vmatprep.subr.mxu0 0.0
    %v777 = vand.u32 %v57, 4294901760
    %v778 = vsub.f32 %v57, %v777
    %v779 = vand.u32 %v778, 4294901760
    %780 = vmatpush2.msra.mxu0 %v779
    %781 = vmatprep.subr.mxu0 0.0
    %v782 = vand.u32 %v56, 4294901760
    %v783 = vsub.f32 %v56, %v782
    %v784 = vand.u32 %v783, 4294901760
    %785 = vmatpush2.msra.mxu0 %v784
    %786 = vmatprep.subr.mxu0 0.0
    %v787 = vand.u32 %v55, 4294901760
    %v788 = vsub.f32 %v55, %v787
    %v789 = vand.u32 %v788, 4294901760
    %790 = vmatpush2.msra.mxu0 %v789
    %791 = vmatprep.subr.mxu0 0.0
    %v792 = vand.u32 %v54, 4294901760
    %v793 = vsub.f32 %v54, %v792
    %v794 = vand.u32 %v793, 4294901760
    %795 = vmatpush2.msra.mxu0 %v794
    %796 = vmatprep.subr.mxu0 0.0
    %v797 = vand.u32 %v53, 4294901760
    %v798 = vsub.f32 %v53, %v797
    %v799 = vand.u32 %v798, 4294901760
    %800 = vmatpush2.msra.mxu0 %v799
    %801 = vmatprep.subr.mxu0 0.0
    %v802 = vand.u32 %v52, 4294901760
    %v803 = vsub.f32 %v52, %v802
    %v804 = vand.u32 %v803, 4294901760
    %805 = vmatpush2.msra.mxu0 %v804
    %806 = vmatprep.subr.mxu0 0.0
    %v807 = vand.u32 %v51, 4294901760
    %v808 = vsub.f32 %v51, %v807
    %v809 = vand.u32 %v808, 4294901760
    %810 = vmatpush2.msra.mxu0 %v809
    %811 = vmatprep.subr.mxu0 0.0
    %v812 = vand.u32 %v50, 4294901760
    %v813 = vsub.f32 %v50, %v812
    %v814 = vand.u32 %v813, 4294901760
    %815 = vmatpush2.msra.mxu0 %v814
    %v816 = vand.u32 %v33, 4294901760
    %817 = vmatprep.mubr.f32.mxu0 %v816
    %v818 = vand.u32 %v32, 4294901760
    %819 = vmatmul.mubr.f32.gmra.mxu0 %v818
    %v820 = vpop.f32.mrf.mxu0
    %v821 = vadd.f32 %v653, %v820
    %v822 = vpop.f32.mrf.mxu0
    %823 = vdwg.mxu0
    %824 = vmatprep.subr.mxu0 0.0
    %v825 = vand.u32 %v49, 4294901760
    %826 = vmatpush1.msra.mxu0 %v825
    %827 = vmatprep.subr.mxu0 0.0
    %v828 = vand.u32 %v48, 4294901760
    %829 = vmatpush1.msra.mxu0 %v828
    %830 = vmatprep.subr.mxu0 0.0
    %v831 = vand.u32 %v47, 4294901760
    %832 = vmatpush1.msra.mxu0 %v831
    %833 = vmatprep.subr.mxu0 0.0
    %v834 = vand.u32 %v46, 4294901760
    %835 = vmatpush1.msra.mxu0 %v834
    %836 = vmatprep.subr.mxu0 0.0
    %v837 = vand.u32 %v45, 4294901760
    %838 = vmatpush1.msra.mxu0 %v837
    %839 = vmatprep.subr.mxu0 0.0
    %v840 = vand.u32 %v44, 4294901760
    %841 = vmatpush1.msra.mxu0 %v840
    %842 = vmatprep.subr.mxu0 0.0
    %v843 = vand.u32 %v43, 4294901760
    %844 = vmatpush1.msra.mxu0 %v843
    %845 = vmatprep.subr.mxu0 0.0
    %v846 = vand.u32 %v42, 4294901760
    %847 = vmatpush1.msra.mxu0 %v846
    %848 = vmatprep.subr.mxu0 0.0
    %v849 = vand.u32 %v41, 4294901760
    %850 = vmatpush1.msra.mxu0 %v849
    %851 = vmatprep.subr.mxu0 0.0
    %v852 = vand.u32 %v40, 4294901760
    %853 = vmatpush1.msra.mxu0 %v852
    %854 = vmatprep.subr.mxu0 0.0
    %v855 = vand.u32 %v39, 4294901760
    %856 = vmatpush1.msra.mxu0 %v855
    %857 = vmatprep.subr.mxu0 0.0
    %v858 = vand.u32 %v38, 4294901760
    %859 = vmatpush1.msra.mxu0 %v858
    %860 = vmatprep.subr.mxu0 0.0
    %v861 = vand.u32 %v37, 4294901760
    %862 = vmatpush1.msra.mxu0 %v861
    %863 = vmatprep.subr.mxu0 0.0
    %v864 = vand.u32 %v36, 4294901760
    %865 = vmatpush1.msra.mxu0 %v864
    %866 = vmatprep.subr.mxu0 0.0
    %v867 = vand.u32 %v35, 4294901760
    %868 = vmatpush1.msra.mxu0 %v867
    %869 = vmatprep.subr.mxu0 0.0
    %v870 = vand.u32 %v34, 4294901760
    %871 = vmatpush1.msra.mxu0 %v870
    %872 = vmatprep.subr.mxu0 0.0
    %v873 = vand.u32 %v65, 4294901760
    %874 = vmatpush2.msra.mxu0 %v873
    %875 = vmatprep.subr.mxu0 0.0
    %v876 = vand.u32 %v64, 4294901760
    %877 = vmatpush2.msra.mxu0 %v876
    %878 = vmatprep.subr.mxu0 0.0
    %v879 = vand.u32 %v63, 4294901760
    %880 = vmatpush2.msra.mxu0 %v879
    %881 = vmatprep.subr.mxu0 0.0
    %v882 = vand.u32 %v62, 4294901760
    %883 = vmatpush2.msra.mxu0 %v882
    %884 = vmatprep.subr.mxu0 0.0
    %v885 = vand.u32 %v61, 4294901760
    %886 = vmatpush2.msra.mxu0 %v885
    %887 = vmatprep.subr.mxu0 0.0
    %v888 = vand.u32 %v60, 4294901760
    %889 = vmatpush2.msra.mxu0 %v888
    %890 = vmatprep.subr.mxu0 0.0
    %v891 = vand.u32 %v59, 4294901760
    %892 = vmatpush2.msra.mxu0 %v891
    %893 = vmatprep.subr.mxu0 0.0
    %v894 = vand.u32 %v58, 4294901760
    %895 = vmatpush2.msra.mxu0 %v894
    %896 = vmatprep.subr.mxu0 0.0
    %v897 = vand.u32 %v57, 4294901760
    %898 = vmatpush2.msra.mxu0 %v897
    %899 = vmatprep.subr.mxu0 0.0
    %v900 = vand.u32 %v56, 4294901760
    %901 = vmatpush2.msra.mxu0 %v900
    %902 = vmatprep.subr.mxu0 0.0
    %v903 = vand.u32 %v55, 4294901760
    %904 = vmatpush2.msra.mxu0 %v903
    %905 = vmatprep.subr.mxu0 0.0
    %v906 = vand.u32 %v54, 4294901760
    %907 = vmatpush2.msra.mxu0 %v906
    %908 = vmatprep.subr.mxu0 0.0
    %v909 = vand.u32 %v53, 4294901760
    %910 = vmatpush2.msra.mxu0 %v909
    %911 = vmatprep.subr.mxu0 0.0
    %v912 = vand.u32 %v52, 4294901760
    %913 = vmatpush2.msra.mxu0 %v912
    %914 = vmatprep.subr.mxu0 0.0
    %v915 = vand.u32 %v51, 4294901760
    %916 = vmatpush2.msra.mxu0 %v915
    %917 = vmatprep.subr.mxu0 0.0
    %v918 = vand.u32 %v50, 4294901760
    %919 = vmatpush2.msra.mxu0 %v918
    %v920 = vand.u32 %v33, 4294901760
    %921 = vmatprep.mubr.f32.mxu0 %v920
    %v922 = vand.u32 %v32, 4294901760
    %923 = vmatmul.mubr.f32.gmra.mxu0 %v922
    %v924 = vpop.f32.mrf.mxu0
    %v925 = vadd.f32 %v821, %v924
    %v926 = vpop.f32.mrf.mxu0
    %927 = vdwg.mxu0
    %v928 = vld [vmem:[#allocation2] sm:$0xff]
    %v929 = vld [vmem:[#allocation2 + $0x8] sm:$0xff]
    %v930 = vld [vmem:[#allocation2 + $0x10] sm:$0xff]
    %v931 = vld [vmem:[#allocation2 + $0x18] sm:$0xff]
    %v932 = vld [vmem:[#allocation2 + $0x20] sm:$0xff]
    %v933 = vld [vmem:[#allocation2 + $0x28] sm:$0xff]
    %v934 = vld [vmem:[#allocation2 + $0x30] sm:$0xff]
    %v935 = vld [vmem:[#allocation2 + $0x38] sm:$0xff]
    %v936 = vld [vmem:[#allocation2 + $0x40] sm:$0xff]
    %v937 = vld [vmem:[#allocation2 + $0x48] sm:$0xff]
    %v938 = vld [vmem:[#allocation2 + $0x50] sm:$0xff]
    %v939 = vld [vmem:[#allocation2 + $0x58] sm:$0xff]
    %v940 = vld [vmem:[#allocation2 + $0x60] sm:$0xff]
    %v941 = vld [vmem:[#allocation2 + $0x68] sm:$0xff]
    %v942 = vld [vmem:[#allocation2 + $0x70] sm:$0xff]
    %v943 = vld [vmem:[#allocation2 + $0x78] sm:$0xff]
    %v944 = vld [vmem:[#allocation2 + $0x80] sm:$0xff]
    %v945 = vld [vmem:[#allocation2 + $0x88] sm:$0xff]
    %v946 = vld [vmem:[#allocation2 + $0x90] sm:$0xff]
    %v947 = vld [vmem:[#allocation2 + $0x98] sm:$0xff]
    %v948 = vld [vmem:[#allocation2 + $0xa0] sm:$0xff]
    %v949 = vld [vmem:[#allocation2 + $0xa8] sm:$0xff]
    %v950 = vld [vmem:[#allocation2 + $0xb0] sm:$0xff]
    %v951 = vld [vmem:[#allocation2 + $0xb8] sm:$0xff]
    %v952 = vld [vmem:[#allocation2 + $0xc0] sm:$0xff]
    %v953 = vld [vmem:[#allocation2 + $0xc8] sm:$0xff]
    %v954 = vld [vmem:[#allocation2 + $0xd0] sm:$0xff]
    %v955 = vld [vmem:[#allocation2 + $0xd8] sm:$0xff]
    %v956 = vld [vmem:[#allocation2 + $0xe0] sm:$0xff]
    %v957 = vld [vmem:[#allocation2 + $0xe8] sm:$0xff]
    %v958 = vld [vmem:[#allocation2 + $0xf0] sm:$0xff]
    %v959 = vld [vmem:[#allocation2 + $0xf8] sm:$0xff]
    %v960 = vld [vmem:[#allocation2 + $0x100] sm:$0xff]
    %v961 = vld [vmem:[#allocation2 + $0x108] sm:$0xff]
    %v962 = vld [vmem:[#allocation2 + $0x110] sm:$0xff]
    %v963 = vld [vmem:[#allocation2 + $0x118] sm:$0xff]
    %v964 = vld [vmem:[#allocation2 + $0x120] sm:$0xff]
    %v965 = vld [vmem:[#allocation2 + $0x128] sm:$0xff]
    %v966 = vld [vmem:[#allocation2 + $0x130] sm:$0xff]
    %v967 = vld [vmem:[#allocation2 + $0x138] sm:$0xff]
    %v968 = vld [vmem:[#allocation2 + $0x140] sm:$0xff]
    %v969 = vld [vmem:[#allocation2 + $0x148] sm:$0xff]
    %v970 = vld [vmem:[#allocation2 + $0x150] sm:$0xff]
    %v971 = vld [vmem:[#allocation2 + $0x158] sm:$0xff]
    %v972 = vld [vmem:[#allocation2 + $0x160] sm:$0xff]
    %v973 = vld [vmem:[#allocation2 + $0x168] sm:$0xff]
    %v974 = vld [vmem:[#allocation2 + $0x170] sm:$0xff]
    %v975 = vld [vmem:[#allocation2 + $0x178] sm:$0xff]
    %v976 = vld [vmem:[#allocation2 + $0x180] sm:$0xff]
    %v977 = vld [vmem:[#allocation2 + $0x188] sm:$0xff]
    %v978 = vld [vmem:[#allocation2 + $0x190] sm:$0xff]
    %v979 = vld [vmem:[#allocation2 + $0x198] sm:$0xff]
    %v980 = vld [vmem:[#allocation2 + $0x1a0] sm:$0xff]
    %v981 = vld [vmem:[#allocation2 + $0x1a8] sm:$0xff]
    %v982 = vld [vmem:[#allocation2 + $0x1b0] sm:$0xff]
    %v983 = vld [vmem:[#allocation2 + $0x1b8] sm:$0xff]
    %v984 = vld [vmem:[#allocation2 + $0x1c0] sm:$0xff]
    %v985 = vld [vmem:[#allocation2 + $0x1c8] sm:$0xff]
    %v986 = vld [vmem:[#allocation2 + $0x1d0] sm:$0xff]
    %v987 = vld [vmem:[#allocation2 + $0x1d8] sm:$0xff]
    %v988 = vld [vmem:[#allocation2 + $0x1e0] sm:$0xff]
    %v989 = vld [vmem:[#allocation2 + $0x1e8] sm:$0xff]
    %v990 = vld [vmem:[#allocation2 + $0x1f0] sm:$0xff]
    %v991 = vld [vmem:[#allocation2 + $0x1f8] sm:$0xff]
    %v992 = vand.u32 %v959, 4294901760
    %993 = vmatprep.subr.mxu0 %v992
    %v994 = vand.u32 %v958, 4294901760
    %995 = vmatpush1.msra.mxu0 %v994
    %v996 = vand.u32 %v957, 4294901760
    %997 = vmatprep.subr.mxu0 %v996
    %v998 = vand.u32 %v956, 4294901760
    %999 = vmatpush1.msra.mxu0 %v998
    %v1000 = vand.u32 %v955, 4294901760
    %1001 = vmatprep.subr.mxu0 %v1000
    %v1002 = vand.u32 %v954, 4294901760
    %1003 = vmatpush1.msra.mxu0 %v1002
    %v1004 = vand.u32 %v953, 4294901760
    %1005 = vmatprep.subr.mxu0 %v1004
    %v1006 = vand.u32 %v952, 4294901760
    %1007 = vmatpush1.msra.mxu0 %v1006
    %v1008 = vand.u32 %v951, 4294901760
    %1009 = vmatprep.subr.mxu0 %v1008
    %v1010 = vand.u32 %v950, 4294901760
    %1011 = vmatpush1.msra.mxu0 %v1010
    %v1012 = vand.u32 %v949, 4294901760
    %1013 = vmatprep.subr.mxu0 %v1012
    %v1014 = vand.u32 %v948, 4294901760
    %1015 = vmatpush1.msra.mxu0 %v1014
    %v1016 = vand.u32 %v947, 4294901760
    %1017 = vmatprep.subr.mxu0 %v1016
    %v1018 = vand.u32 %v946, 4294901760
    %1019 = vmatpush1.msra.mxu0 %v1018
    %v1020 = vand.u32 %v945, 4294901760
    %1021 = vmatprep.subr.mxu0 %v1020
    %v1022 = vand.u32 %v944, 4294901760
    %1023 = vmatpush1.msra.mxu0 %v1022
    %v1024 = vand.u32 %v943, 4294901760
    %1025 = vmatprep.subr.mxu0 %v1024
    %v1026 = vand.u32 %v942, 4294901760
    %1027 = vmatpush1.msra.mxu0 %v1026
    %v1028 = vand.u32 %v941, 4294901760
    %1029 = vmatprep.subr.mxu0 %v1028
    %v1030 = vand.u32 %v940, 4294901760
    %1031 = vmatpush1.msra.mxu0 %v1030
    %v1032 = vand.u32 %v939, 4294901760
    %1033 = vmatprep.subr.mxu0 %v1032
    %v1034 = vand.u32 %v938, 4294901760
    %1035 = vmatpush1.msra.mxu0 %v1034
    %v1036 = vand.u32 %v937, 4294901760
    %1037 = vmatprep.subr.mxu0 %v1036
    %v1038 = vand.u32 %v936, 4294901760
    %1039 = vmatpush1.msra.mxu0 %v1038
    %v1040 = vand.u32 %v935, 4294901760
    %1041 = vmatprep.subr.mxu0 %v1040
    %v1042 = vand.u32 %v934, 4294901760
    %1043 = vmatpush1.msra.mxu0 %v1042
    %v1044 = vand.u32 %v933, 4294901760
    %1045 = vmatprep.subr.mxu0 %v1044
    %v1046 = vand.u32 %v932, 4294901760
    %1047 = vmatpush1.msra.mxu0 %v1046
    %v1048 = vand.u32 %v931, 4294901760
    %1049 = vmatprep.subr.mxu0 %v1048
    %v1050 = vand.u32 %v930, 4294901760
    %1051 = vmatpush1.msra.mxu0 %v1050
    %v1052 = vand.u32 %v929, 4294901760
    %1053 = vmatprep.subr.mxu0 %v1052
    %v1054 = vand.u32 %v928, 4294901760
    %1055 = vmatpush1.msra.mxu0 %v1054
    %v1056 = vand.u32 %v991, 4294901760
    %1057 = vmatprep.subr.mxu0 %v1056
    %v1058 = vand.u32 %v990, 4294901760
    %1059 = vmatpush2.msra.mxu0 %v1058
    %v1060 = vand.u32 %v989, 4294901760
    %1061 = vmatprep.subr.mxu0 %v1060
    %v1062 = vand.u32 %v988, 4294901760
    %1063 = vmatpush2.msra.mxu0 %v1062
    %v1064 = vand.u32 %v987, 4294901760
    %1065 = vmatprep.subr.mxu0 %v1064
    %v1066 = vand.u32 %v986, 4294901760
    %1067 = vmatpush2.msra.mxu0 %v1066
    %v1068 = vand.u32 %v985, 4294901760
    %1069 = vmatprep.subr.mxu0 %v1068
    %v1070 = vand.u32 %v984, 4294901760
    %1071 = vmatpush2.msra.mxu0 %v1070
    %v1072 = vand.u32 %v983, 4294901760
    %1073 = vmatprep.subr.mxu0 %v1072
    %v1074 = vand.u32 %v982, 4294901760
    %1075 = vmatpush2.msra.mxu0 %v1074
    %v1076 = vand.u32 %v981, 4294901760
    %1077 = vmatprep.subr.mxu0 %v1076
    %v1078 = vand.u32 %v980, 4294901760
    %1079 = vmatpush2.msra.mxu0 %v1078
    %v1080 = vand.u32 %v979, 4294901760
    %1081 = vmatprep.subr.mxu0 %v1080
    %v1082 = vand.u32 %v978, 4294901760
    %1083 = vmatpush2.msra.mxu0 %v1082
    %v1084 = vand.u32 %v977, 4294901760
    %1085 = vmatprep.subr.mxu0 %v1084
    %v1086 = vand.u32 %v976, 4294901760
    %1087 = vmatpush2.msra.mxu0 %v1086
    %v1088 = vand.u32 %v975, 4294901760
    %1089 = vmatprep.subr.mxu0 %v1088
    %v1090 = vand.u32 %v974, 4294901760
    %1091 = vmatpush2.msra.mxu0 %v1090
    %v1092 = vand.u32 %v973, 4294901760
    %1093 = vmatprep.subr.mxu0 %v1092
    %v1094 = vand.u32 %v972, 4294901760
    %1095 = vmatpush2.msra.mxu0 %v1094
    %v1096 = vand.u32 %v971, 4294901760
    %1097 = vmatprep.subr.mxu0 %v1096
    %v1098 = vand.u32 %v970, 4294901760
    %1099 = vmatpush2.msra.mxu0 %v1098
    %v1100 = vand.u32 %v969, 4294901760
    %1101 = vmatprep.subr.mxu0 %v1100
    %v1102 = vand.u32 %v968, 4294901760
    %1103 = vmatpush2.msra.mxu0 %v1102
    %v1104 = vand.u32 %v967, 4294901760
    %1105 = vmatprep.subr.mxu0 %v1104
    %v1106 = vand.u32 %v966, 4294901760
    %1107 = vmatpush2.msra.mxu0 %v1106
    %v1108 = vand.u32 %v965, 4294901760
    %1109 = vmatprep.subr.mxu0 %v1108
    %v1110 = vand.u32 %v964, 4294901760
    %1111 = vmatpush2.msra.mxu0 %v1110
    %v1112 = vand.u32 %v963, 4294901760
    %1113 = vmatprep.subr.mxu0 %v1112
    %v1114 = vand.u32 %v962, 4294901760
    %1115 = vmatpush2.msra.mxu0 %v1114
    %v1116 = vand.u32 %v961, 4294901760
    %1117 = vmatprep.subr.mxu0 %v1116
    %v1118 = vand.u32 %v960, 4294901760
    %1119 = vmatpush2.msra.mxu0 %v1118
    %v1120 = vand.u32 %v33, 4294901760
    %v1121 = vsub.f32 %v33, %v1120
    %v1122 = vand.u32 %v1121, 4294901760
    %v1123 = vsub.f32 %v1121, %v1122
    %v1124 = vand.u32 %v1123, 4294901760
    %1125 = vmatprep.mubr.f32.mxu0 %v1124
    %v1126 = vand.u32 %v32, 4294901760
    %v1127 = vsub.f32 %v32, %v1126
    %v1128 = vand.u32 %v1127, 4294901760
    %v1129 = vsub.f32 %v1127, %v1128
    %v1130 = vand.u32 %v1129, 4294901760
    %1131 = vmatmul.mubr.f32.gmra.mxu0 %v1130
    %v1132 = vpop.f32.mrf.mxu0
    %v1133 = vadd.f32 0.0, %v1132
    %v1134 = vpop.f32.mrf.mxu0
    %v1135 = vadd.f32 0.0, %v1134
    %1136 = vdwg.mxu0
    %v1137 = vand.u32 %v959, 4294901760
    %v1138 = vsub.f32 %v959, %v1137
    %v1139 = vand.u32 %v1138, 4294901760
    %v1140 = vsub.f32 %v1138, %v1139
    %v1141 = vand.u32 %v1140, 4294901760
    %1142 = vmatprep.subr.mxu0 %v1141
    %v1143 = vand.u32 %v958, 4294901760
    %v1144 = vsub.f32 %v958, %v1143
    %v1145 = vand.u32 %v1144, 4294901760
    %v1146 = vsub.f32 %v1144, %v1145
    %v1147 = vand.u32 %v1146, 4294901760
    %1148 = vmatpush1.msra.mxu0 %v1147
    %v1149 = vand.u32 %v957, 4294901760
    %v1150 = vsub.f32 %v957, %v1149
    %v1151 = vand.u32 %v1150, 4294901760
    %v1152 = vsub.f32 %v1150, %v1151
    %v1153 = vand.u32 %v1152, 4294901760
    %1154 = vmatprep.subr.mxu0 %v1153
    %v1155 = vand.u32 %v956, 4294901760
    %v1156 = vsub.f32 %v956, %v1155
    %v1157 = vand.u32 %v1156, 4294901760
    %v1158 = vsub.f32 %v1156, %v1157
    %v1159 = vand.u32 %v1158, 4294901760
    %1160 = vmatpush1.msra.mxu0 %v1159
    %v1161 = vand.u32 %v955, 4294901760
    %v1162 = vsub.f32 %v955, %v1161
    %v1163 = vand.u32 %v1162, 4294901760
    %v1164 = vsub.f32 %v1162, %v1163
    %v1165 = vand.u32 %v1164, 4294901760
    %1166 = vmatprep.subr.mxu0 %v1165
    %v1167 = vand.u32 %v954, 4294901760
    %v1168 = vsub.f32 %v954, %v1167
    %v1169 = vand.u32 %v1168, 4294901760
    %v1170 = vsub.f32 %v1168, %v1169
    %v1171 = vand.u32 %v1170, 4294901760
    %1172 = vmatpush1.msra.mxu0 %v1171
    %v1173 = vand.u32 %v953, 4294901760
    %v1174 = vsub.f32 %v953, %v1173
    %v1175 = vand.u32 %v1174, 4294901760
    %v1176 = vsub.f32 %v1174, %v1175
    %v1177 = vand.u32 %v1176, 4294901760
    %1178 = vmatprep.subr.mxu0 %v1177
    %v1179 = vand.u32 %v952, 4294901760
    %v1180 = vsub.f32 %v952, %v1179
    %v1181 = vand.u32 %v1180, 4294901760
    %v1182 = vsub.f32 %v1180, %v1181
    %v1183 = vand.u32 %v1182, 4294901760
    %1184 = vmatpush1.msra.mxu0 %v1183
    %v1185 = vand.u32 %v951, 4294901760
    %v1186 = vsub.f32 %v951, %v1185
    %v1187 = vand.u32 %v1186, 4294901760
    %v1188 = vsub.f32 %v1186, %v1187
    %v1189 = vand.u32 %v1188, 4294901760
    %1190 = vmatprep.subr.mxu0 %v1189
    %v1191 = vand.u32 %v950, 4294901760
    %v1192 = vsub.f32 %v950, %v1191
    %v1193 = vand.u32 %v1192, 4294901760
    %v1194 = vsub.f32 %v1192, %v1193
    %v1195 = vand.u32 %v1194, 4294901760
    %1196 = vmatpush1.msra.mxu0 %v1195
    %v1197 = vand.u32 %v949, 4294901760
    %v1198 = vsub.f32 %v949, %v1197
    %v1199 = vand.u32 %v1198, 4294901760
    %v1200 = vsub.f32 %v1198, %v1199
    %v1201 = vand.u32 %v1200, 4294901760
    %1202 = vmatprep.subr.mxu0 %v1201
    %v1203 = vand.u32 %v948, 4294901760
    %v1204 = vsub.f32 %v948, %v1203
    %v1205 = vand.u32 %v1204, 4294901760
    %v1206 = vsub.f32 %v1204, %v1205
    %v1207 = vand.u32 %v1206, 4294901760
    %1208 = vmatpush1.msra.mxu0 %v1207
    %v1209 = vand.u32 %v947, 4294901760
    %v1210 = vsub.f32 %v947, %v1209
    %v1211 = vand.u32 %v1210, 4294901760
    %v1212 = vsub.f32 %v1210, %v1211
    %v1213 = vand.u32 %v1212, 4294901760
    %1214 = vmatprep.subr.mxu0 %v1213
    %v1215 = vand.u32 %v946, 4294901760
    %v1216 = vsub.f32 %v946, %v1215
    %v1217 = vand.u32 %v1216, 4294901760
    %v1218 = vsub.f32 %v1216, %v1217
    %v1219 = vand.u32 %v1218, 4294901760
    %1220 = vmatpush1.msra.mxu0 %v1219
    %v1221 = vand.u32 %v945, 4294901760
    %v1222 = vsub.f32 %v945, %v1221
    %v1223 = vand.u32 %v1222, 4294901760
    %v1224 = vsub.f32 %v1222, %v1223
    %v1225 = vand.u32 %v1224, 4294901760
    %1226 = vmatprep.subr.mxu0 %v1225
    %v1227 = vand.u32 %v944, 4294901760
    %v1228 = vsub.f32 %v944, %v1227
    %v1229 = vand.u32 %v1228, 4294901760
    %v1230 = vsub.f32 %v1228, %v1229
    %v1231 = vand.u32 %v1230, 4294901760
    %1232 = vmatpush1.msra.mxu0 %v1231
    %v1233 = vand.u32 %v943, 4294901760
    %v1234 = vsub.f32 %v943, %v1233
    %v1235 = vand.u32 %v1234, 4294901760
    %v1236 = vsub.f32 %v1234, %v1235
    %v1237 = vand.u32 %v1236, 4294901760
    %1238 = vmatprep.subr.mxu0 %v1237
    %v1239 = vand.u32 %v942, 4294901760
    %v1240 = vsub.f32 %v942, %v1239
    %v1241 = vand.u32 %v1240, 4294901760
    %v1242 = vsub.f32 %v1240, %v1241
    %v1243 = vand.u32 %v1242, 4294901760
    %1244 = vmatpush1.msra.mxu0 %v1243
    %v1245 = vand.u32 %v941, 4294901760
    %v1246 = vsub.f32 %v941, %v1245
    %v1247 = vand.u32 %v1246, 4294901760
    %v1248 = vsub.f32 %v1246, %v1247
    %v1249 = vand.u32 %v1248, 4294901760
    %1250 = vmatprep.subr.mxu0 %v1249
    %v1251 = vand.u32 %v940, 4294901760
    %v1252 = vsub.f32 %v940, %v1251
    %v1253 = vand.u32 %v1252, 4294901760
    %v1254 = vsub.f32 %v1252, %v1253
    %v1255 = vand.u32 %v1254, 4294901760
    %1256 = vmatpush1.msra.mxu0 %v1255
    %v1257 = vand.u32 %v939, 4294901760
    %v1258 = vsub.f32 %v939, %v1257
    %v1259 = vand.u32 %v1258, 4294901760
    %v1260 = vsub.f32 %v1258, %v1259
    %v1261 = vand.u32 %v1260, 4294901760
    %1262 = vmatprep.subr.mxu0 %v1261
    %v1263 = vand.u32 %v938, 4294901760
    %v1264 = vsub.f32 %v938, %v1263
    %v1265 = vand.u32 %v1264, 4294901760
    %v1266 = vsub.f32 %v1264, %v1265
    %v1267 = vand.u32 %v1266, 4294901760
    %1268 = vmatpush1.msra.mxu0 %v1267
    %v1269 = vand.u32 %v937, 4294901760
    %v1270 = vsub.f32 %v937, %v1269
    %v1271 = vand.u32 %v1270, 4294901760
    %v1272 = vsub.f32 %v1270, %v1271
    %v1273 = vand.u32 %v1272, 4294901760
    %1274 = vmatprep.subr.mxu0 %v1273
    %v1275 = vand.u32 %v936, 4294901760
    %v1276 = vsub.f32 %v936, %v1275
    %v1277 = vand.u32 %v1276, 4294901760
    %v1278 = vsub.f32 %v1276, %v1277
    %v1279 = vand.u32 %v1278, 4294901760
    %1280 = vmatpush1.msra.mxu0 %v1279
    %v1281 = vand.u32 %v935, 4294901760
    %v1282 = vsub.f32 %v935, %v1281
    %v1283 = vand.u32 %v1282, 4294901760
    %v1284 = vsub.f32 %v1282, %v1283
    %v1285 = vand.u32 %v1284, 4294901760
    %1286 = vmatprep.subr.mxu0 %v1285
    %v1287 = vand.u32 %v934, 4294901760
    %v1288 = vsub.f32 %v934, %v1287
    %v1289 = vand.u32 %v1288, 4294901760
    %v1290 = vsub.f32 %v1288, %v1289
    %v1291 = vand.u32 %v1290, 4294901760
    %1292 = vmatpush1.msra.mxu0 %v1291
    %v1293 = vand.u32 %v933, 4294901760
    %v1294 = vsub.f32 %v933, %v1293
    %v1295 = vand.u32 %v1294, 4294901760
    %v1296 = vsub.f32 %v1294, %v1295
    %v1297 = vand.u32 %v1296, 4294901760
    %1298 = vmatprep.subr.mxu0 %v1297
    %v1299 = vand.u32 %v932, 4294901760
    %v1300 = vsub.f32 %v932, %v1299
    %v1301 = vand.u32 %v1300, 4294901760
    %v1302 = vsub.f32 %v1300, %v1301
    %v1303 = vand.u32 %v1302, 4294901760
    %1304 = vmatpush1.msra.mxu0 %v1303
    %v1305 = vand.u32 %v931, 4294901760
    %v1306 = vsub.f32 %v931, %v1305
    %v1307 = vand.u32 %v1306, 4294901760
    %v1308 = vsub.f32 %v1306, %v1307
    %v1309 = vand.u32 %v1308, 4294901760
    %1310 = vmatprep.subr.mxu0 %v1309
    %v1311 = vand.u32 %v930, 4294901760
    %v1312 = vsub.f32 %v930, %v1311
    %v1313 = vand.u32 %v1312, 4294901760
    %v1314 = vsub.f32 %v1312, %v1313
    %v1315 = vand.u32 %v1314, 4294901760
    %1316 = vmatpush1.msra.mxu0 %v1315
    %v1317 = vand.u32 %v929, 4294901760
    %v1318 = vsub.f32 %v929, %v1317
    %v1319 = vand.u32 %v1318, 4294901760
    %v1320 = vsub.f32 %v1318, %v1319
    %v1321 = vand.u32 %v1320, 4294901760
    %1322 = vmatprep.subr.mxu0 %v1321
    %v1323 = vand.u32 %v928, 4294901760
    %v1324 = vsub.f32 %v928, %v1323
    %v1325 = vand.u32 %v1324, 4294901760
    %v1326 = vsub.f32 %v1324, %v1325
    %v1327 = vand.u32 %v1326, 4294901760
    %1328 = vmatpush1.msra.mxu0 %v1327
    %v1329 = vand.u32 %v991, 4294901760
    %v1330 = vsub.f32 %v991, %v1329
    %v1331 = vand.u32 %v1330, 4294901760
    %v1332 = vsub.f32 %v1330, %v1331
    %v1333 = vand.u32 %v1332, 4294901760
    %1334 = vmatprep.subr.mxu0 %v1333
    %v1335 = vand.u32 %v990, 4294901760
    %v1336 = vsub.f32 %v990, %v1335
    %v1337 = vand.u32 %v1336, 4294901760
    %v1338 = vsub.f32 %v1336, %v1337
    %v1339 = vand.u32 %v1338, 4294901760
    %1340 = vmatpush2.msra.mxu0 %v1339
    %v1341 = vand.u32 %v989, 4294901760
    %v1342 = vsub.f32 %v989, %v1341
    %v1343 = vand.u32 %v1342, 4294901760
    %v1344 = vsub.f32 %v1342, %v1343
    %v1345 = vand.u32 %v1344, 4294901760
    %1346 = vmatprep.subr.mxu0 %v1345
    %v1347 = vand.u32 %v988, 4294901760
    %v1348 = vsub.f32 %v988, %v1347
    %v1349 = vand.u32 %v1348, 4294901760
    %v1350 = vsub.f32 %v1348, %v1349
    %v1351 = vand.u32 %v1350, 4294901760
    %1352 = vmatpush2.msra.mxu0 %v1351
    %v1353 = vand.u32 %v987, 4294901760
    %v1354 = vsub.f32 %v987, %v1353
    %v1355 = vand.u32 %v1354, 4294901760
    %v1356 = vsub.f32 %v1354, %v1355
    %v1357 = vand.u32 %v1356, 4294901760
    %1358 = vmatprep.subr.mxu0 %v1357
    %v1359 = vand.u32 %v986, 4294901760
    %v1360 = vsub.f32 %v986, %v1359
    %v1361 = vand.u32 %v1360, 4294901760
    %v1362 = vsub.f32 %v1360, %v1361
    %v1363 = vand.u32 %v1362, 4294901760
    %1364 = vmatpush2.msra.mxu0 %v1363
    %v1365 = vand.u32 %v985, 4294901760
    %v1366 = vsub.f32 %v985, %v1365
    %v1367 = vand.u32 %v1366, 4294901760
    %v1368 = vsub.f32 %v1366, %v1367
    %v1369 = vand.u32 %v1368, 4294901760
    %1370 = vmatprep.subr.mxu0 %v1369
    %v1371 = vand.u32 %v984, 4294901760
    %v1372 = vsub.f32 %v984, %v1371
    %v1373 = vand.u32 %v1372, 4294901760
    %v1374 = vsub.f32 %v1372, %v1373
    %v1375 = vand.u32 %v1374, 4294901760
    %1376 = vmatpush2.msra.mxu0 %v1375
    %v1377 = vand.u32 %v983, 4294901760
    %v1378 = vsub.f32 %v983, %v1377
    %v1379 = vand.u32 %v1378, 4294901760
    %v1380 = vsub.f32 %v1378, %v1379
    %v1381 = vand.u32 %v1380, 4294901760
    %1382 = vmatprep.subr.mxu0 %v1381
    %v1383 = vand.u32 %v982, 4294901760
    %v1384 = vsub.f32 %v982, %v1383
    %v1385 = vand.u32 %v1384, 4294901760
    %v1386 = vsub.f32 %v1384, %v1385
    %v1387 = vand.u32 %v1386, 4294901760
    %1388 = vmatpush2.msra.mxu0 %v1387
    %v1389 = vand.u32 %v981, 4294901760
    %v1390 = vsub.f32 %v981, %v1389
    %v1391 = vand.u32 %v1390, 4294901760
    %v1392 = vsub.f32 %v1390, %v1391
    %v1393 = vand.u32 %v1392, 4294901760
    %1394 = vmatprep.subr.mxu0 %v1393
    %v1395 = vand.u32 %v980, 4294901760
    %v1396 = vsub.f32 %v980, %v1395
    %v1397 = vand.u32 %v1396, 4294901760
    %v1398 = vsub.f32 %v1396, %v1397
    %v1399 = vand.u32 %v1398, 4294901760
    %1400 = vmatpush2.msra.mxu0 %v1399
    %v1401 = vand.u32 %v979, 4294901760
    %v1402 = vsub.f32 %v979, %v1401
    %v1403 = vand.u32 %v1402, 4294901760
    %v1404 = vsub.f32 %v1402, %v1403
    %v1405 = vand.u32 %v1404, 4294901760
    %1406 = vmatprep.subr.mxu0 %v1405
    %v1407 = vand.u32 %v978, 4294901760
    %v1408 = vsub.f32 %v978, %v1407
    %v1409 = vand.u32 %v1408, 4294901760
    %v1410 = vsub.f32 %v1408, %v1409
    %v1411 = vand.u32 %v1410, 4294901760
    %1412 = vmatpush2.msra.mxu0 %v1411
    %v1413 = vand.u32 %v977, 4294901760
    %v1414 = vsub.f32 %v977, %v1413
    %v1415 = vand.u32 %v1414, 4294901760
    %v1416 = vsub.f32 %v1414, %v1415
    %v1417 = vand.u32 %v1416, 4294901760
    %1418 = vmatprep.subr.mxu0 %v1417
    %v1419 = vand.u32 %v976, 4294901760
    %v1420 = vsub.f32 %v976, %v1419
    %v1421 = vand.u32 %v1420, 4294901760
    %v1422 = vsub.f32 %v1420, %v1421
    %v1423 = vand.u32 %v1422, 4294901760
    %1424 = vmatpush2.msra.mxu0 %v1423
    %v1425 = vand.u32 %v975, 4294901760
    %v1426 = vsub.f32 %v975, %v1425
    %v1427 = vand.u32 %v1426, 4294901760
    %v1428 = vsub.f32 %v1426, %v1427
    %v1429 = vand.u32 %v1428, 4294901760
    %1430 = vmatprep.subr.mxu0 %v1429
    %v1431 = vand.u32 %v974, 4294901760
    %v1432 = vsub.f32 %v974, %v1431
    %v1433 = vand.u32 %v1432, 4294901760
    %v1434 = vsub.f32 %v1432, %v1433
    %v1435 = vand.u32 %v1434, 4294901760
    %1436 = vmatpush2.msra.mxu0 %v1435
    %v1437 = vand.u32 %v973, 4294901760
    %v1438 = vsub.f32 %v973, %v1437
    %v1439 = vand.u32 %v1438, 4294901760
    %v1440 = vsub.f32 %v1438, %v1439
    %v1441 = vand.u32 %v1440, 4294901760
    %1442 = vmatprep.subr.mxu0 %v1441
    %v1443 = vand.u32 %v972, 4294901760
    %v1444 = vsub.f32 %v972, %v1443
    %v1445 = vand.u32 %v1444, 4294901760
    %v1446 = vsub.f32 %v1444, %v1445
    %v1447 = vand.u32 %v1446, 4294901760
    %1448 = vmatpush2.msra.mxu0 %v1447
    %v1449 = vand.u32 %v971, 4294901760
    %v1450 = vsub.f32 %v971, %v1449
    %v1451 = vand.u32 %v1450, 4294901760
    %v1452 = vsub.f32 %v1450, %v1451
    %v1453 = vand.u32 %v1452, 4294901760
    %1454 = vmatprep.subr.mxu0 %v1453
    %v1455 = vand.u32 %v970, 4294901760
    %v1456 = vsub.f32 %v970, %v1455
    %v1457 = vand.u32 %v1456, 4294901760
    %v1458 = vsub.f32 %v1456, %v1457
    %v1459 = vand.u32 %v1458, 4294901760
    %1460 = vmatpush2.msra.mxu0 %v1459
    %v1461 = vand.u32 %v969, 4294901760
    %v1462 = vsub.f32 %v969, %v1461
    %v1463 = vand.u32 %v1462, 4294901760
    %v1464 = vsub.f32 %v1462, %v1463
    %v1465 = vand.u32 %v1464, 4294901760
    %1466 = vmatprep.subr.mxu0 %v1465
    %v1467 = vand.u32 %v968, 4294901760
    %v1468 = vsub.f32 %v968, %v1467
    %v1469 = vand.u32 %v1468, 4294901760
    %v1470 = vsub.f32 %v1468, %v1469
    %v1471 = vand.u32 %v1470, 4294901760
    %1472 = vmatpush2.msra.mxu0 %v1471
    %v1473 = vand.u32 %v967, 4294901760
    %v1474 = vsub.f32 %v967, %v1473
    %v1475 = vand.u32 %v1474, 4294901760
    %v1476 = vsub.f32 %v1474, %v1475
    %v1477 = vand.u32 %v1476, 4294901760
    %1478 = vmatprep.subr.mxu0 %v1477
    %v1479 = vand.u32 %v966, 4294901760
    %v1480 = vsub.f32 %v966, %v1479
    %v1481 = vand.u32 %v1480, 4294901760
    %v1482 = vsub.f32 %v1480, %v1481
    %v1483 = vand.u32 %v1482, 4294901760
    %1484 = vmatpush2.msra.mxu0 %v1483
    %v1485 = vand.u32 %v965, 4294901760
    %v1486 = vsub.f32 %v965, %v1485
    %v1487 = vand.u32 %v1486, 4294901760
    %v1488 = vsub.f32 %v1486, %v1487
    %v1489 = vand.u32 %v1488, 4294901760
    %1490 = vmatprep.subr.mxu0 %v1489
    %v1491 = vand.u32 %v964, 4294901760
    %v1492 = vsub.f32 %v964, %v1491
    %v1493 = vand.u32 %v1492, 4294901760
    %v1494 = vsub.f32 %v1492, %v1493
    %v1495 = vand.u32 %v1494, 4294901760
    %1496 = vmatpush2.msra.mxu0 %v1495
    %v1497 = vand.u32 %v963, 4294901760
    %v1498 = vsub.f32 %v963, %v1497
    %v1499 = vand.u32 %v1498, 4294901760
    %v1500 = vsub.f32 %v1498, %v1499
    %v1501 = vand.u32 %v1500, 4294901760
    %1502 = vmatprep.subr.mxu0 %v1501
    %v1503 = vand.u32 %v962, 4294901760
    %v1504 = vsub.f32 %v962, %v1503
    %v1505 = vand.u32 %v1504, 4294901760
    %v1506 = vsub.f32 %v1504, %v1505
    %v1507 = vand.u32 %v1506, 4294901760
    %1508 = vmatpush2.msra.mxu0 %v1507
    %v1509 = vand.u32 %v961, 4294901760
    %v1510 = vsub.f32 %v961, %v1509
    %v1511 = vand.u32 %v1510, 4294901760
    %v1512 = vsub.f32 %v1510, %v1511
    %v1513 = vand.u32 %v1512, 4294901760
    %1514 = vmatprep.subr.mxu0 %v1513
    %v1515 = vand.u32 %v960, 4294901760
    %v1516 = vsub.f32 %v960, %v1515
    %v1517 = vand.u32 %v1516, 4294901760
    %v1518 = vsub.f32 %v1516, %v1517
    %v1519 = vand.u32 %v1518, 4294901760
    %1520 = vmatpush2.msra.mxu0 %v1519
    %v1521 = vand.u32 %v33, 4294901760
    %1522 = vmatprep.mubr.f32.mxu0 %v1521
    %v1523 = vand.u32 %v32, 4294901760
    %1524 = vmatmul.mubr.f32.gmra.mxu0 %v1523
    %v1525 = vpop.f32.mrf.mxu0
    %v1526 = vadd.f32 %v1133, %v1525
    %v1527 = vpop.f32.mrf.mxu0
    %v1528 = vadd.f32 %v1135, %v1527
    %1529 = vdwg.mxu0
    %v1530 = vand.u32 %v959, 4294901760
    %v1531 = vsub.f32 %v959, %v1530
    %1532 = vmatprep.subr.mxu0 %v1531
    %v1533 = vand.u32 %v958, 4294901760
    %v1534 = vsub.f32 %v958, %v1533
    %1535 = vmatpush1.msra.mxu0 %v1534
    %v1536 = vand.u32 %v957, 4294901760
    %v1537 = vsub.f32 %v957, %v1536
    %1538 = vmatprep.subr.mxu0 %v1537
    %v1539 = vand.u32 %v956, 4294901760
    %v1540 = vsub.f32 %v956, %v1539
    %1541 = vmatpush1.msra.mxu0 %v1540
    %v1542 = vand.u32 %v955, 4294901760
    %v1543 = vsub.f32 %v955, %v1542
    %1544 = vmatprep.subr.mxu0 %v1543
    %v1545 = vand.u32 %v954, 4294901760
    %v1546 = vsub.f32 %v954, %v1545
    %1547 = vmatpush1.msra.mxu0 %v1546
    %v1548 = vand.u32 %v953, 4294901760
    %v1549 = vsub.f32 %v953, %v1548
    %1550 = vmatprep.subr.mxu0 %v1549
    %v1551 = vand.u32 %v952, 4294901760
    %v1552 = vsub.f32 %v952, %v1551
    %1553 = vmatpush1.msra.mxu0 %v1552
    %v1554 = vand.u32 %v951, 4294901760
    %v1555 = vsub.f32 %v951, %v1554
    %1556 = vmatprep.subr.mxu0 %v1555
    %v1557 = vand.u32 %v950, 4294901760
    %v1558 = vsub.f32 %v950, %v1557
    %1559 = vmatpush1.msra.mxu0 %v1558
    %v1560 = vand.u32 %v949, 4294901760
    %v1561 = vsub.f32 %v949, %v1560
    %1562 = vmatprep.subr.mxu0 %v1561
    %v1563 = vand.u32 %v948, 4294901760
    %v1564 = vsub.f32 %v948, %v1563
    %1565 = vmatpush1.msra.mxu0 %v1564
    %v1566 = vand.u32 %v947, 4294901760
    %v1567 = vsub.f32 %v947, %v1566
    %1568 = vmatprep.subr.mxu0 %v1567
    %v1569 = vand.u32 %v946, 4294901760
    %v1570 = vsub.f32 %v946, %v1569
    %1571 = vmatpush1.msra.mxu0 %v1570
    %v1572 = vand.u32 %v945, 4294901760
    %v1573 = vsub.f32 %v945, %v1572
    %1574 = vmatprep.subr.mxu0 %v1573
    %v1575 = vand.u32 %v944, 4294901760
    %v1576 = vsub.f32 %v944, %v1575
    %1577 = vmatpush1.msra.mxu0 %v1576
    %v1578 = vand.u32 %v943, 4294901760
    %v1579 = vsub.f32 %v943, %v1578
    %1580 = vmatprep.subr.mxu0 %v1579
    %v1581 = vand.u32 %v942, 4294901760
    %v1582 = vsub.f32 %v942, %v1581
    %1583 = vmatpush1.msra.mxu0 %v1582
    %v1584 = vand.u32 %v941, 4294901760
    %v1585 = vsub.f32 %v941, %v1584
    %1586 = vmatprep.subr.mxu0 %v1585
    %v1587 = vand.u32 %v940, 4294901760
    %v1588 = vsub.f32 %v940, %v1587
    %1589 = vmatpush1.msra.mxu0 %v1588
    %v1590 = vand.u32 %v939, 4294901760
    %v1591 = vsub.f32 %v939, %v1590
    %1592 = vmatprep.subr.mxu0 %v1591
    %v1593 = vand.u32 %v938, 4294901760
    %v1594 = vsub.f32 %v938, %v1593
    %1595 = vmatpush1.msra.mxu0 %v1594
    %v1596 = vand.u32 %v937, 4294901760
    %v1597 = vsub.f32 %v937, %v1596
    %1598 = vmatprep.subr.mxu0 %v1597
    %v1599 = vand.u32 %v936, 4294901760
    %v1600 = vsub.f32 %v936, %v1599
    %1601 = vmatpush1.msra.mxu0 %v1600
    %v1602 = vand.u32 %v935, 4294901760
    %v1603 = vsub.f32 %v935, %v1602
    %1604 = vmatprep.subr.mxu0 %v1603
    %v1605 = vand.u32 %v934, 4294901760
    %v1606 = vsub.f32 %v934, %v1605
    %1607 = vmatpush1.msra.mxu0 %v1606
    %v1608 = vand.u32 %v933, 4294901760
    %v1609 = vsub.f32 %v933, %v1608
    %1610 = vmatprep.subr.mxu0 %v1609
    %v1611 = vand.u32 %v932, 4294901760
    %v1612 = vsub.f32 %v932, %v1611
    %1613 = vmatpush1.msra.mxu0 %v1612
    %v1614 = vand.u32 %v931, 4294901760
    %v1615 = vsub.f32 %v931, %v1614
    %1616 = vmatprep.subr.mxu0 %v1615
    %v1617 = vand.u32 %v930, 4294901760
    %v1618 = vsub.f32 %v930, %v1617
    %1619 = vmatpush1.msra.mxu0 %v1618
    %v1620 = vand.u32 %v929, 4294901760
    %v1621 = vsub.f32 %v929, %v1620
    %1622 = vmatprep.subr.mxu0 %v1621
    %v1623 = vand.u32 %v928, 4294901760
    %v1624 = vsub.f32 %v928, %v1623
    %1625 = vmatpush1.msra.mxu0 %v1624
    %v1626 = vand.u32 %v991, 4294901760
    %v1627 = vsub.f32 %v991, %v1626
    %1628 = vmatprep.subr.mxu0 %v1627
    %v1629 = vand.u32 %v990, 4294901760
    %v1630 = vsub.f32 %v990, %v1629
    %1631 = vmatpush2.msra.mxu0 %v1630
    %v1632 = vand.u32 %v989, 4294901760
    %v1633 = vsub.f32 %v989, %v1632
    %1634 = vmatprep.subr.mxu0 %v1633
    %v1635 = vand.u32 %v988, 4294901760
    %v1636 = vsub.f32 %v988, %v1635
    %1637 = vmatpush2.msra.mxu0 %v1636
    %v1638 = vand.u32 %v987, 4294901760
    %v1639 = vsub.f32 %v987, %v1638
    %1640 = vmatprep.subr.mxu0 %v1639
    %v1641 = vand.u32 %v986, 4294901760
    %v1642 = vsub.f32 %v986, %v1641
    %1643 = vmatpush2.msra.mxu0 %v1642
    %v1644 = vand.u32 %v985, 4294901760
    %v1645 = vsub.f32 %v985, %v1644
    %1646 = vmatprep.subr.mxu0 %v1645
    %v1647 = vand.u32 %v984, 4294901760
    %v1648 = vsub.f32 %v984, %v1647
    %1649 = vmatpush2.msra.mxu0 %v1648
    %v1650 = vand.u32 %v983, 4294901760
    %v1651 = vsub.f32 %v983, %v1650
    %1652 = vmatprep.subr.mxu0 %v1651
    %v1653 = vand.u32 %v982, 4294901760
    %v1654 = vsub.f32 %v982, %v1653
    %1655 = vmatpush2.msra.mxu0 %v1654
    %v1656 = vand.u32 %v981, 4294901760
    %v1657 = vsub.f32 %v981, %v1656
    %1658 = vmatprep.subr.mxu0 %v1657
    %v1659 = vand.u32 %v980, 4294901760
    %v1660 = vsub.f32 %v980, %v1659
    %1661 = vmatpush2.msra.mxu0 %v1660
    %v1662 = vand.u32 %v979, 4294901760
    %v1663 = vsub.f32 %v979, %v1662
    %1664 = vmatprep.subr.mxu0 %v1663
    %v1665 = vand.u32 %v978, 4294901760
    %v1666 = vsub.f32 %v978, %v1665
    %1667 = vmatpush2.msra.mxu0 %v1666
    %v1668 = vand.u32 %v977, 4294901760
    %v1669 = vsub.f32 %v977, %v1668
    %1670 = vmatprep.subr.mxu0 %v1669
    %v1671 = vand.u32 %v976, 4294901760
    %v1672 = vsub.f32 %v976, %v1671
    %1673 = vmatpush2.msra.mxu0 %v1672
    %v1674 = vand.u32 %v975, 4294901760
    %v1675 = vsub.f32 %v975, %v1674
    %1676 = vmatprep.subr.mxu0 %v1675
    %v1677 = vand.u32 %v974, 4294901760
    %v1678 = vsub.f32 %v974, %v1677
    %1679 = vmatpush2.msra.mxu0 %v1678
    %v1680 = vand.u32 %v973, 4294901760
    %v1681 = vsub.f32 %v973, %v1680
    %1682 = vmatprep.subr.mxu0 %v1681
    %v1683 = vand.u32 %v972, 4294901760
    %v1684 = vsub.f32 %v972, %v1683
    %1685 = vmatpush2.msra.mxu0 %v1684
    %v1686 = vand.u32 %v971, 4294901760
    %v1687 = vsub.f32 %v971, %v1686
    %1688 = vmatprep.subr.mxu0 %v1687
    %v1689 = vand.u32 %v970, 4294901760
    %v1690 = vsub.f32 %v970, %v1689
    %1691 = vmatpush2.msra.mxu0 %v1690
    %v1692 = vand.u32 %v969, 4294901760
    %v1693 = vsub.f32 %v969, %v1692
    %1694 = vmatprep.subr.mxu0 %v1693
    %v1695 = vand.u32 %v968, 4294901760
    %v1696 = vsub.f32 %v968, %v1695
    %1697 = vmatpush2.msra.mxu0 %v1696
    %v1698 = vand.u32 %v967, 4294901760
    %v1699 = vsub.f32 %v967, %v1698
    %1700 = vmatprep.subr.mxu0 %v1699
    %v1701 = vand.u32 %v966, 4294901760
    %v1702 = vsub.f32 %v966, %v1701
    %1703 = vmatpush2.msra.mxu0 %v1702
    %v1704 = vand.u32 %v965, 4294901760
    %v1705 = vsub.f32 %v965, %v1704
    %1706 = vmatprep.subr.mxu0 %v1705
    %v1707 = vand.u32 %v964, 4294901760
    %v1708 = vsub.f32 %v964, %v1707
    %1709 = vmatpush2.msra.mxu0 %v1708
    %v1710 = vand.u32 %v963, 4294901760
    %v1711 = vsub.f32 %v963, %v1710
    %1712 = vmatprep.subr.mxu0 %v1711
    %v1713 = vand.u32 %v962, 4294901760
    %v1714 = vsub.f32 %v962, %v1713
    %1715 = vmatpush2.msra.mxu0 %v1714
    %v1716 = vand.u32 %v961, 4294901760
    %v1717 = vsub.f32 %v961, %v1716
    %1718 = vmatprep.subr.mxu0 %v1717
    %v1719 = vand.u32 %v960, 4294901760
    %v1720 = vsub.f32 %v960, %v1719
    %1721 = vmatpush2.msra.mxu0 %v1720
    %v1722 = vand.u32 %v33, 4294901760
    %v1723 = vsub.f32 %v33, %v1722
    %1724 = vmatprep.mubr.f32.mxu0 %v1723
    %v1725 = vand.u32 %v32, 4294901760
    %v1726 = vsub.f32 %v32, %v1725
    %1727 = vmatmul.mubr.f32.gmra.mxu0 %v1726
    %v1728 = vpop.f32.mrf.mxu0
    %v1729 = vadd.f32 %v1526, %v1728
    %v1730 = vpop.f32.mrf.mxu0
    %v1731 = vadd.f32 %v1528, %v1730
    %1732 = vdwg.mxu0
    %v1733 = vand.u32 %v959, 4294901760
    %1734 = vmatprep.subr.mxu0 %v1733
    %v1735 = vand.u32 %v958, 4294901760
    %1736 = vmatpush1.msra.mxu0 %v1735
    %v1737 = vand.u32 %v957, 4294901760
    %1738 = vmatprep.subr.mxu0 %v1737
    %v1739 = vand.u32 %v956, 4294901760
    %1740 = vmatpush1.msra.mxu0 %v1739
    %v1741 = vand.u32 %v955, 4294901760
    %1742 = vmatprep.subr.mxu0 %v1741
    %v1743 = vand.u32 %v954, 4294901760
    %1744 = vmatpush1.msra.mxu0 %v1743
    %v1745 = vand.u32 %v953, 4294901760
    %1746 = vmatprep.subr.mxu0 %v1745
    %v1747 = vand.u32 %v952, 4294901760
    %1748 = vmatpush1.msra.mxu0 %v1747
    %v1749 = vand.u32 %v951, 4294901760
    %1750 = vmatprep.subr.mxu0 %v1749
    %v1751 = vand.u32 %v950, 4294901760
    %1752 = vmatpush1.msra.mxu0 %v1751
    %v1753 = vand.u32 %v949, 4294901760
    %1754 = vmatprep.subr.mxu0 %v1753
    %v1755 = vand.u32 %v948, 4294901760
    %1756 = vmatpush1.msra.mxu0 %v1755
    %v1757 = vand.u32 %v947, 4294901760
    %1758 = vmatprep.subr.mxu0 %v1757
    %v1759 = vand.u32 %v946, 4294901760
    %1760 = vmatpush1.msra.mxu0 %v1759
    %v1761 = vand.u32 %v945, 4294901760
    %1762 = vmatprep.subr.mxu0 %v1761
    %v1763 = vand.u32 %v944, 4294901760
    %1764 = vmatpush1.msra.mxu0 %v1763
    %v1765 = vand.u32 %v943, 4294901760
    %1766 = vmatprep.subr.mxu0 %v1765
    %v1767 = vand.u32 %v942, 4294901760
    %1768 = vmatpush1.msra.mxu0 %v1767
    %v1769 = vand.u32 %v941, 4294901760
    %1770 = vmatprep.subr.mxu0 %v1769
    %v1771 = vand.u32 %v940, 4294901760
    %1772 = vmatpush1.msra.mxu0 %v1771
    %v1773 = vand.u32 %v939, 4294901760
    %1774 = vmatprep.subr.mxu0 %v1773
    %v1775 = vand.u32 %v938, 4294901760
    %1776 = vmatpush1.msra.mxu0 %v1775
    %v1777 = vand.u32 %v937, 4294901760
    %1778 = vmatprep.subr.mxu0 %v1777
    %v1779 = vand.u32 %v936, 4294901760
    %1780 = vmatpush1.msra.mxu0 %v1779
    %v1781 = vand.u32 %v935, 4294901760
    %1782 = vmatprep.subr.mxu0 %v1781
    %v1783 = vand.u32 %v934, 4294901760
    %1784 = vmatpush1.msra.mxu0 %v1783
    %v1785 = vand.u32 %v933, 4294901760
    %1786 = vmatprep.subr.mxu0 %v1785
    %v1787 = vand.u32 %v932, 4294901760
    %1788 = vmatpush1.msra.mxu0 %v1787
    %v1789 = vand.u32 %v931, 4294901760
    %1790 = vmatprep.subr.mxu0 %v1789
    %v1791 = vand.u32 %v930, 4294901760
    %1792 = vmatpush1.msra.mxu0 %v1791
    %v1793 = vand.u32 %v929, 4294901760
    %1794 = vmatprep.subr.mxu0 %v1793
    %v1795 = vand.u32 %v928, 4294901760
    %1796 = vmatpush1.msra.mxu0 %v1795
    %v1797 = vand.u32 %v991, 4294901760
    %1798 = vmatprep.subr.mxu0 %v1797
    %v1799 = vand.u32 %v990, 4294901760
    %1800 = vmatpush2.msra.mxu0 %v1799
    %v1801 = vand.u32 %v989, 4294901760
    %1802 = vmatprep.subr.mxu0 %v1801
    %v1803 = vand.u32 %v988, 4294901760
    %1804 = vmatpush2.msra.mxu0 %v1803
    %v1805 = vand.u32 %v987, 4294901760
    %1806 = vmatprep.subr.mxu0 %v1805
    %v1807 = vand.u32 %v986, 4294901760
    %1808 = vmatpush2.msra.mxu0 %v1807
    %v1809 = vand.u32 %v985, 4294901760
    %1810 = vmatprep.subr.mxu0 %v1809
    %v1811 = vand.u32 %v984, 4294901760
    %1812 = vmatpush2.msra.mxu0 %v1811
    %v1813 = vand.u32 %v983, 4294901760
    %1814 = vmatprep.subr.mxu0 %v1813
    %v1815 = vand.u32 %v982, 4294901760
    %1816 = vmatpush2.msra.mxu0 %v1815
    %v1817 = vand.u32 %v981, 4294901760
    %1818 = vmatprep.subr.mxu0 %v1817
    %v1819 = vand.u32 %v980, 4294901760
    %1820 = vmatpush2.msra.mxu0 %v1819
    %v1821 = vand.u32 %v979, 4294901760
    %1822 = vmatprep.subr.mxu0 %v1821
    %v1823 = vand.u32 %v978, 4294901760
    %1824 = vmatpush2.msra.mxu0 %v1823
    %v1825 = vand.u32 %v977, 4294901760
    %1826 = vmatprep.subr.mxu0 %v1825
    %v1827 = vand.u32 %v976, 4294901760
    %1828 = vmatpush2.msra.mxu0 %v1827
    %v1829 = vand.u32 %v975, 4294901760
    %1830 = vmatprep.subr.mxu0 %v1829
    %v1831 = vand.u32 %v974, 4294901760
    %1832 = vmatpush2.msra.mxu0 %v1831
    %v1833 = vand.u32 %v973, 4294901760
    %1834 = vmatprep.subr.mxu0 %v1833
    %v1835 = vand.u32 %v972, 4294901760
    %1836 = vmatpush2.msra.mxu0 %v1835
    %v1837 = vand.u32 %v971, 4294901760
    %1838 = vmatprep.subr.mxu0 %v1837
    %v1839 = vand.u32 %v970, 4294901760
    %1840 = vmatpush2.msra.mxu0 %v1839
    %v1841 = vand.u32 %v969, 4294901760
    %1842 = vmatprep.subr.mxu0 %v1841
    %v1843 = vand.u32 %v968, 4294901760
    %1844 = vmatpush2.msra.mxu0 %v1843
    %v1845 = vand.u32 %v967, 4294901760
    %1846 = vmatprep.subr.mxu0 %v1845
    %v1847 = vand.u32 %v966, 4294901760
    %1848 = vmatpush2.msra.mxu0 %v1847
    %v1849 = vand.u32 %v965, 4294901760
    %1850 = vmatprep.subr.mxu0 %v1849
    %v1851 = vand.u32 %v964, 4294901760
    %1852 = vmatpush2.msra.mxu0 %v1851
    %v1853 = vand.u32 %v963, 4294901760
    %1854 = vmatprep.subr.mxu0 %v1853
    %v1855 = vand.u32 %v962, 4294901760
    %1856 = vmatpush2.msra.mxu0 %v1855
    %v1857 = vand.u32 %v961, 4294901760
    %1858 = vmatprep.subr.mxu0 %v1857
    %v1859 = vand.u32 %v960, 4294901760
    %1860 = vmatpush2.msra.mxu0 %v1859
    %v1861 = vand.u32 %v33, 4294901760
    %v1862 = vsub.f32 %v33, %v1861
    %v1863 = vand.u32 %v1862, 4294901760
    %1864 = vmatprep.mubr.f32.mxu0 %v1863
    %v1865 = vand.u32 %v32, 4294901760
    %v1866 = vsub.f32 %v32, %v1865
    %v1867 = vand.u32 %v1866, 4294901760
    %1868 = vmatmul.mubr.f32.gmra.mxu0 %v1867
    %v1869 = vpop.f32.mrf.mxu0
    %v1870 = vadd.f32 %v1729, %v1869
    %v1871 = vpop.f32.mrf.mxu0
    %v1872 = vadd.f32 %v1731, %v1871
    %1873 = vdwg.mxu0
    %v1874 = vand.u32 %v959, 4294901760
    %v1875 = vsub.f32 %v959, %v1874
    %v1876 = vand.u32 %v1875, 4294901760
    %1877 = vmatprep.subr.mxu0 %v1876
    %v1878 = vand.u32 %v958, 4294901760
    %v1879 = vsub.f32 %v958, %v1878
    %v1880 = vand.u32 %v1879, 4294901760
    %1881 = vmatpush1.msra.mxu0 %v1880
    %v1882 = vand.u32 %v957, 4294901760
    %v1883 = vsub.f32 %v957, %v1882
    %v1884 = vand.u32 %v1883, 4294901760
    %1885 = vmatprep.subr.mxu0 %v1884
    %v1886 = vand.u32 %v956, 4294901760
    %v1887 = vsub.f32 %v956, %v1886
    %v1888 = vand.u32 %v1887, 4294901760
    %1889 = vmatpush1.msra.mxu0 %v1888
    %v1890 = vand.u32 %v955, 4294901760
    %v1891 = vsub.f32 %v955, %v1890
    %v1892 = vand.u32 %v1891, 4294901760
    %1893 = vmatprep.subr.mxu0 %v1892
    %v1894 = vand.u32 %v954, 4294901760
    %v1895 = vsub.f32 %v954, %v1894
    %v1896 = vand.u32 %v1895, 4294901760
    %1897 = vmatpush1.msra.mxu0 %v1896
    %v1898 = vand.u32 %v953, 4294901760
    %v1899 = vsub.f32 %v953, %v1898
    %v1900 = vand.u32 %v1899, 4294901760
    %1901 = vmatprep.subr.mxu0 %v1900
    %v1902 = vand.u32 %v952, 4294901760
    %v1903 = vsub.f32 %v952, %v1902
    %v1904 = vand.u32 %v1903, 4294901760
    %1905 = vmatpush1.msra.mxu0 %v1904
    %v1906 = vand.u32 %v951, 4294901760
    %v1907 = vsub.f32 %v951, %v1906
    %v1908 = vand.u32 %v1907, 4294901760
    %1909 = vmatprep.subr.mxu0 %v1908
    %v1910 = vand.u32 %v950, 4294901760
    %v1911 = vsub.f32 %v950, %v1910
    %v1912 = vand.u32 %v1911, 4294901760
    %1913 = vmatpush1.msra.mxu0 %v1912
    %v1914 = vand.u32 %v949, 4294901760
    %v1915 = vsub.f32 %v949, %v1914
    %v1916 = vand.u32 %v1915, 4294901760
    %1917 = vmatprep.subr.mxu0 %v1916
    %v1918 = vand.u32 %v948, 4294901760
    %v1919 = vsub.f32 %v948, %v1918
    %v1920 = vand.u32 %v1919, 4294901760
    %1921 = vmatpush1.msra.mxu0 %v1920
    %v1922 = vand.u32 %v947, 4294901760
    %v1923 = vsub.f32 %v947, %v1922
    %v1924 = vand.u32 %v1923, 4294901760
    %1925 = vmatprep.subr.mxu0 %v1924
    %v1926 = vand.u32 %v946, 4294901760
    %v1927 = vsub.f32 %v946, %v1926
    %v1928 = vand.u32 %v1927, 4294901760
    %1929 = vmatpush1.msra.mxu0 %v1928
    %v1930 = vand.u32 %v945, 4294901760
    %v1931 = vsub.f32 %v945, %v1930
    %v1932 = vand.u32 %v1931, 4294901760
    %1933 = vmatprep.subr.mxu0 %v1932
    %v1934 = vand.u32 %v944, 4294901760
    %v1935 = vsub.f32 %v944, %v1934
    %v1936 = vand.u32 %v1935, 4294901760
    %1937 = vmatpush1.msra.mxu0 %v1936
    %v1938 = vand.u32 %v943, 4294901760
    %v1939 = vsub.f32 %v943, %v1938
    %v1940 = vand.u32 %v1939, 4294901760
    %1941 = vmatprep.subr.mxu0 %v1940
    %v1942 = vand.u32 %v942, 4294901760
    %v1943 = vsub.f32 %v942, %v1942
    %v1944 = vand.u32 %v1943, 4294901760
    %1945 = vmatpush1.msra.mxu0 %v1944
    %v1946 = vand.u32 %v941, 4294901760
    %v1947 = vsub.f32 %v941, %v1946
    %v1948 = vand.u32 %v1947, 4294901760
    %1949 = vmatprep.subr.mxu0 %v1948
    %v1950 = vand.u32 %v940, 4294901760
    %v1951 = vsub.f32 %v940, %v1950
    %v1952 = vand.u32 %v1951, 4294901760
    %1953 = vmatpush1.msra.mxu0 %v1952
    %v1954 = vand.u32 %v939, 4294901760
    %v1955 = vsub.f32 %v939, %v1954
    %v1956 = vand.u32 %v1955, 4294901760
    %1957 = vmatprep.subr.mxu0 %v1956
    %v1958 = vand.u32 %v938, 4294901760
    %v1959 = vsub.f32 %v938, %v1958
    %v1960 = vand.u32 %v1959, 4294901760
    %1961 = vmatpush1.msra.mxu0 %v1960
    %v1962 = vand.u32 %v937, 4294901760
    %v1963 = vsub.f32 %v937, %v1962
    %v1964 = vand.u32 %v1963, 4294901760
    %1965 = vmatprep.subr.mxu0 %v1964
    %v1966 = vand.u32 %v936, 4294901760
    %v1967 = vsub.f32 %v936, %v1966
    %v1968 = vand.u32 %v1967, 4294901760
    %1969 = vmatpush1.msra.mxu0 %v1968
    %v1970 = vand.u32 %v935, 4294901760
    %v1971 = vsub.f32 %v935, %v1970
    %v1972 = vand.u32 %v1971, 4294901760
    %1973 = vmatprep.subr.mxu0 %v1972
    %v1974 = vand.u32 %v934, 4294901760
    %v1975 = vsub.f32 %v934, %v1974
    %v1976 = vand.u32 %v1975, 4294901760
    %1977 = vmatpush1.msra.mxu0 %v1976
    %v1978 = vand.u32 %v933, 4294901760
    %v1979 = vsub.f32 %v933, %v1978
    %v1980 = vand.u32 %v1979, 4294901760
    %1981 = vmatprep.subr.mxu0 %v1980
    %v1982 = vand.u32 %v932, 4294901760
    %v1983 = vsub.f32 %v932, %v1982
    %v1984 = vand.u32 %v1983, 4294901760
    %1985 = vmatpush1.msra.mxu0 %v1984
    %v1986 = vand.u32 %v931, 4294901760
    %v1987 = vsub.f32 %v931, %v1986
    %v1988 = vand.u32 %v1987, 4294901760
    %1989 = vmatprep.subr.mxu0 %v1988
    %v1990 = vand.u32 %v930, 4294901760
    %v1991 = vsub.f32 %v930, %v1990
    %v1992 = vand.u32 %v1991, 4294901760
    %1993 = vmatpush1.msra.mxu0 %v1992
    %v1994 = vand.u32 %v929, 4294901760
    %v1995 = vsub.f32 %v929, %v1994
    %v1996 = vand.u32 %v1995, 4294901760
    %1997 = vmatprep.subr.mxu0 %v1996
    %v1998 = vand.u32 %v928, 4294901760
    %v1999 = vsub.f32 %v928, %v1998
    %v2000 = vand.u32 %v1999, 4294901760
    %2001 = vmatpush1.msra.mxu0 %v2000
    %v2002 = vand.u32 %v991, 4294901760
    %v2003 = vsub.f32 %v991, %v2002
    %v2004 = vand.u32 %v2003, 4294901760
    %2005 = vmatprep.subr.mxu0 %v2004
    %v2006 = vand.u32 %v990, 4294901760
    %v2007 = vsub.f32 %v990, %v2006
    %v2008 = vand.u32 %v2007, 4294901760
    %2009 = vmatpush2.msra.mxu0 %v2008
    %v2010 = vand.u32 %v989, 4294901760
    %v2011 = vsub.f32 %v989, %v2010
    %v2012 = vand.u32 %v2011, 4294901760
    %2013 = vmatprep.subr.mxu0 %v2012
    %v2014 = vand.u32 %v988, 4294901760
    %v2015 = vsub.f32 %v988, %v2014
    %v2016 = vand.u32 %v2015, 4294901760
    %2017 = vmatpush2.msra.mxu0 %v2016
    %v2018 = vand.u32 %v987, 4294901760
    %v2019 = vsub.f32 %v987, %v2018
    %v2020 = vand.u32 %v2019, 4294901760
    %2021 = vmatprep.subr.mxu0 %v2020
    %v2022 = vand.u32 %v986, 4294901760
    %v2023 = vsub.f32 %v986, %v2022
    %v2024 = vand.u32 %v2023, 4294901760
    %2025 = vmatpush2.msra.mxu0 %v2024
    %v2026 = vand.u32 %v985, 4294901760
    %v2027 = vsub.f32 %v985, %v2026
    %v2028 = vand.u32 %v2027, 4294901760
    %2029 = vmatprep.subr.mxu0 %v2028
    %v2030 = vand.u32 %v984, 4294901760
    %v2031 = vsub.f32 %v984, %v2030
    %v2032 = vand.u32 %v2031, 4294901760
    %2033 = vmatpush2.msra.mxu0 %v2032
    %v2034 = vand.u32 %v983, 4294901760
    %v2035 = vsub.f32 %v983, %v2034
    %v2036 = vand.u32 %v2035, 4294901760
    %2037 = vmatprep.subr.mxu0 %v2036
    %v2038 = vand.u32 %v982, 4294901760
    %v2039 = vsub.f32 %v982, %v2038
    %v2040 = vand.u32 %v2039, 4294901760
    %2041 = vmatpush2.msra.mxu0 %v2040
    %v2042 = vand.u32 %v981, 4294901760
    %v2043 = vsub.f32 %v981, %v2042
    %v2044 = vand.u32 %v2043, 4294901760
    %2045 = vmatprep.subr.mxu0 %v2044
    %v2046 = vand.u32 %v980, 4294901760
    %v2047 = vsub.f32 %v980, %v2046
    %v2048 = vand.u32 %v2047, 4294901760
    %2049 = vmatpush2.msra.mxu0 %v2048
    %v2050 = vand.u32 %v979, 4294901760
    %v2051 = vsub.f32 %v979, %v2050
    %v2052 = vand.u32 %v2051, 4294901760
    %2053 = vmatprep.subr.mxu0 %v2052
    %v2054 = vand.u32 %v978, 4294901760
    %v2055 = vsub.f32 %v978, %v2054
    %v2056 = vand.u32 %v2055, 4294901760
    %2057 = vmatpush2.msra.mxu0 %v2056
    %v2058 = vand.u32 %v977, 4294901760
    %v2059 = vsub.f32 %v977, %v2058
    %v2060 = vand.u32 %v2059, 4294901760
    %2061 = vmatprep.subr.mxu0 %v2060
    %v2062 = vand.u32 %v976, 4294901760
    %v2063 = vsub.f32 %v976, %v2062
    %v2064 = vand.u32 %v2063, 4294901760
    %2065 = vmatpush2.msra.mxu0 %v2064
    %v2066 = vand.u32 %v975, 4294901760
    %v2067 = vsub.f32 %v975, %v2066
    %v2068 = vand.u32 %v2067, 4294901760
    %2069 = vmatprep.subr.mxu0 %v2068
    %v2070 = vand.u32 %v974, 4294901760
    %v2071 = vsub.f32 %v974, %v2070
    %v2072 = vand.u32 %v2071, 4294901760
    %2073 = vmatpush2.msra.mxu0 %v2072
    %v2074 = vand.u32 %v973, 4294901760
    %v2075 = vsub.f32 %v973, %v2074
    %v2076 = vand.u32 %v2075, 4294901760
    %2077 = vmatprep.subr.mxu0 %v2076
    %v2078 = vand.u32 %v972, 4294901760
    %v2079 = vsub.f32 %v972, %v2078
    %v2080 = vand.u32 %v2079, 4294901760
    %2081 = vmatpush2.msra.mxu0 %v2080
    %v2082 = vand.u32 %v971, 4294901760
    %v2083 = vsub.f32 %v971, %v2082
    %v2084 = vand.u32 %v2083, 4294901760
    %2085 = vmatprep.subr.mxu0 %v2084
    %v2086 = vand.u32 %v970, 4294901760
    %v2087 = vsub.f32 %v970, %v2086
    %v2088 = vand.u32 %v2087, 4294901760
    %2089 = vmatpush2.msra.mxu0 %v2088
    %v2090 = vand.u32 %v969, 4294901760
    %v2091 = vsub.f32 %v969, %v2090
    %v2092 = vand.u32 %v2091, 4294901760
    %2093 = vmatprep.subr.mxu0 %v2092
    %v2094 = vand.u32 %v968, 4294901760
    %v2095 = vsub.f32 %v968, %v2094
    %v2096 = vand.u32 %v2095, 4294901760
    %2097 = vmatpush2.msra.mxu0 %v2096
    %v2098 = vand.u32 %v967, 4294901760
    %v2099 = vsub.f32 %v967, %v2098
    %v2100 = vand.u32 %v2099, 4294901760
    %2101 = vmatprep.subr.mxu0 %v2100
    %v2102 = vand.u32 %v966, 4294901760
    %v2103 = vsub.f32 %v966, %v2102
    %v2104 = vand.u32 %v2103, 4294901760
    %2105 = vmatpush2.msra.mxu0 %v2104
    %v2106 = vand.u32 %v965, 4294901760
    %v2107 = vsub.f32 %v965, %v2106
    %v2108 = vand.u32 %v2107, 4294901760
    %2109 = vmatprep.subr.mxu0 %v2108
    %v2110 = vand.u32 %v964, 4294901760
    %v2111 = vsub.f32 %v964, %v2110
    %v2112 = vand.u32 %v2111, 4294901760
    %2113 = vmatpush2.msra.mxu0 %v2112
    %v2114 = vand.u32 %v963, 4294901760
    %v2115 = vsub.f32 %v963, %v2114
    %v2116 = vand.u32 %v2115, 4294901760
    %2117 = vmatprep.subr.mxu0 %v2116
    %v2118 = vand.u32 %v962, 4294901760
    %v2119 = vsub.f32 %v962, %v2118
    %v2120 = vand.u32 %v2119, 4294901760
    %2121 = vmatpush2.msra.mxu0 %v2120
    %v2122 = vand.u32 %v961, 4294901760
    %v2123 = vsub.f32 %v961, %v2122
    %v2124 = vand.u32 %v2123, 4294901760
    %2125 = vmatprep.subr.mxu0 %v2124
    %v2126 = vand.u32 %v960, 4294901760
    %v2127 = vsub.f32 %v960, %v2126
    %v2128 = vand.u32 %v2127, 4294901760
    %2129 = vmatpush2.msra.mxu0 %v2128
    %v2130 = vand.u32 %v33, 4294901760
    %2131 = vmatprep.mubr.f32.mxu0 %v2130
    %v2132 = vand.u32 %v32, 4294901760
    %2133 = vmatmul.mubr.f32.gmra.mxu0 %v2132
    %v2134 = vpop.f32.mrf.mxu0
    %v2135 = vadd.f32 %v1870, %v2134
    %v2136 = vpop.f32.mrf.mxu0
    %v2137 = vadd.f32 %v1872, %v2136
    %2138 = vdwg.mxu0
    %v2139 = vand.u32 %v959, 4294901760
    %2140 = vmatprep.subr.mxu0 %v2139
    %v2141 = vand.u32 %v958, 4294901760
    %2142 = vmatpush1.msra.mxu0 %v2141
    %v2143 = vand.u32 %v957, 4294901760
    %2144 = vmatprep.subr.mxu0 %v2143
    %v2145 = vand.u32 %v956, 4294901760
    %2146 = vmatpush1.msra.mxu0 %v2145
    %v2147 = vand.u32 %v955, 4294901760
    %2148 = vmatprep.subr.mxu0 %v2147
    %v2149 = vand.u32 %v954, 4294901760
    %2150 = vmatpush1.msra.mxu0 %v2149
    %v2151 = vand.u32 %v953, 4294901760
    %2152 = vmatprep.subr.mxu0 %v2151
    %v2153 = vand.u32 %v952, 4294901760
    %2154 = vmatpush1.msra.mxu0 %v2153
    %v2155 = vand.u32 %v951, 4294901760
    %2156 = vmatprep.subr.mxu0 %v2155
    %v2157 = vand.u32 %v950, 4294901760
    %2158 = vmatpush1.msra.mxu0 %v2157
    %v2159 = vand.u32 %v949, 4294901760
    %2160 = vmatprep.subr.mxu0 %v2159
    %v2161 = vand.u32 %v948, 4294901760
    %2162 = vmatpush1.msra.mxu0 %v2161
    %v2163 = vand.u32 %v947, 4294901760
    %2164 = vmatprep.subr.mxu0 %v2163
    %v2165 = vand.u32 %v946, 4294901760
    %2166 = vmatpush1.msra.mxu0 %v2165
    %v2167 = vand.u32 %v945, 4294901760
    %2168 = vmatprep.subr.mxu0 %v2167
    %v2169 = vand.u32 %v944, 4294901760
    %2170 = vmatpush1.msra.mxu0 %v2169
    %v2171 = vand.u32 %v943, 4294901760
    %2172 = vmatprep.subr.mxu0 %v2171
    %v2173 = vand.u32 %v942, 4294901760
    %2174 = vmatpush1.msra.mxu0 %v2173
    %v2175 = vand.u32 %v941, 4294901760
    %2176 = vmatprep.subr.mxu0 %v2175
    %v2177 = vand.u32 %v940, 4294901760
    %2178 = vmatpush1.msra.mxu0 %v2177
    %v2179 = vand.u32 %v939, 4294901760
    %2180 = vmatprep.subr.mxu0 %v2179
    %v2181 = vand.u32 %v938, 4294901760
    %2182 = vmatpush1.msra.mxu0 %v2181
    %v2183 = vand.u32 %v937, 4294901760
    %2184 = vmatprep.subr.mxu0 %v2183
    %v2185 = vand.u32 %v936, 4294901760
    %2186 = vmatpush1.msra.mxu0 %v2185
    %v2187 = vand.u32 %v935, 4294901760
    %2188 = vmatprep.subr.mxu0 %v2187
    %v2189 = vand.u32 %v934, 4294901760
    %2190 = vmatpush1.msra.mxu0 %v2189
    %v2191 = vand.u32 %v933, 4294901760
    %2192 = vmatprep.subr.mxu0 %v2191
    %v2193 = vand.u32 %v932, 4294901760
    %2194 = vmatpush1.msra.mxu0 %v2193
    %v2195 = vand.u32 %v931, 4294901760
    %2196 = vmatprep.subr.mxu0 %v2195
    %v2197 = vand.u32 %v930, 4294901760
    %2198 = vmatpush1.msra.mxu0 %v2197
    %v2199 = vand.u32 %v929, 4294901760
    %2200 = vmatprep.subr.mxu0 %v2199
    %v2201 = vand.u32 %v928, 4294901760
    %2202 = vmatpush1.msra.mxu0 %v2201
    %v2203 = vand.u32 %v991, 4294901760
    %2204 = vmatprep.subr.mxu0 %v2203
    %v2205 = vand.u32 %v990, 4294901760
    %2206 = vmatpush2.msra.mxu0 %v2205
    %v2207 = vand.u32 %v989, 4294901760
    %2208 = vmatprep.subr.mxu0 %v2207
    %v2209 = vand.u32 %v988, 4294901760
    %2210 = vmatpush2.msra.mxu0 %v2209
    %v2211 = vand.u32 %v987, 4294901760
    %2212 = vmatprep.subr.mxu0 %v2211
    %v2213 = vand.u32 %v986, 4294901760
    %2214 = vmatpush2.msra.mxu0 %v2213
    %v2215 = vand.u32 %v985, 4294901760
    %2216 = vmatprep.subr.mxu0 %v2215
    %v2217 = vand.u32 %v984, 4294901760
    %2218 = vmatpush2.msra.mxu0 %v2217
    %v2219 = vand.u32 %v983, 4294901760
    %2220 = vmatprep.subr.mxu0 %v2219
    %v2221 = vand.u32 %v982, 4294901760
    %2222 = vmatpush2.msra.mxu0 %v2221
    %v2223 = vand.u32 %v981, 4294901760
    %2224 = vmatprep.subr.mxu0 %v2223
    %v2225 = vand.u32 %v980, 4294901760
    %2226 = vmatpush2.msra.mxu0 %v2225
    %v2227 = vand.u32 %v979, 4294901760
    %2228 = vmatprep.subr.mxu0 %v2227
    %v2229 = vand.u32 %v978, 4294901760
    %2230 = vmatpush2.msra.mxu0 %v2229
    %v2231 = vand.u32 %v977, 4294901760
    %2232 = vmatprep.subr.mxu0 %v2231
    %v2233 = vand.u32 %v976, 4294901760
    %2234 = vmatpush2.msra.mxu0 %v2233
    %v2235 = vand.u32 %v975, 4294901760
    %2236 = vmatprep.subr.mxu0 %v2235
    %v2237 = vand.u32 %v974, 4294901760
    %2238 = vmatpush2.msra.mxu0 %v2237
    %v2239 = vand.u32 %v973, 4294901760
    %2240 = vmatprep.subr.mxu0 %v2239
    %v2241 = vand.u32 %v972, 4294901760
    %2242 = vmatpush2.msra.mxu0 %v2241
    %v2243 = vand.u32 %v971, 4294901760
    %2244 = vmatprep.subr.mxu0 %v2243
    %v2245 = vand.u32 %v970, 4294901760
    %2246 = vmatpush2.msra.mxu0 %v2245
    %v2247 = vand.u32 %v969, 4294901760
    %2248 = vmatprep.subr.mxu0 %v2247
    %v2249 = vand.u32 %v968, 4294901760
    %2250 = vmatpush2.msra.mxu0 %v2249
    %v2251 = vand.u32 %v967, 4294901760
    %2252 = vmatprep.subr.mxu0 %v2251
    %v2253 = vand.u32 %v966, 4294901760
    %2254 = vmatpush2.msra.mxu0 %v2253
    %v2255 = vand.u32 %v965, 4294901760
    %2256 = vmatprep.subr.mxu0 %v2255
    %v2257 = vand.u32 %v964, 4294901760
    %2258 = vmatpush2.msra.mxu0 %v2257
    %v2259 = vand.u32 %v963, 4294901760
    %2260 = vmatprep.subr.mxu0 %v2259
    %v2261 = vand.u32 %v962, 4294901760
    %2262 = vmatpush2.msra.mxu0 %v2261
    %v2263 = vand.u32 %v961, 4294901760
    %2264 = vmatprep.subr.mxu0 %v2263
    %v2265 = vand.u32 %v960, 4294901760
    %2266 = vmatpush2.msra.mxu0 %v2265
    %v2267 = vand.u32 %v33, 4294901760
    %2268 = vmatprep.mubr.f32.mxu0 %v2267
    %v2269 = vand.u32 %v32, 4294901760
    %2270 = vmatmul.mubr.f32.gmra.mxu0 %v2269
    %v2271 = vpop.f32.mrf.mxu0
    %v2272 = vadd.f32 %v2135, %v2271
    %v2273 = vpop.f32.mrf.mxu0
    %v2274 = vadd.f32 %v2137, %v2273
    %2275 = vdwg.mxu0
    %vm2276 = vcmask 523264
    %2277 = vst.msk [vmem:[#allocation5] sm:$0xff] %vm2276, %v925
    %2278 = vst [vmem:[#allocation6] sm:$0xff] %v2272
    %2279 = vst [vmem:[#allocation6 + $0x8] sm:$0xff] %v2274
    // Predicated region
    $region18: #{tpu_custom_call.1} parent=1 // pred_check
      _
    $region19: #{tpu_custom_call.1} parent=1 // pred_check_branch
      %2281 = sbr.rel (0) target = $region21
    $region20: #{tpu_custom_call.1} parent=1 // pred_region
      %s2283 = ssub.s32 128, 128
      %2284 = vsyncadd [#allocation4], %s2283
      %s2286 = sshll.u32 [#allocation5], 4
      %s2287 = int_to_ptr.vmem [resolvable:$true] %s2286
      %2289 = dma.vmem_to_hbm [thread:$0]  %s2287, 128, %s3, [#allocation4]
    $region21: #{tpu_custom_call.1} parent=1 // pred_fallthru
      _
    // Predicated region
    $region22: #{tpu_custom_call.1} parent=1 // pred_check
      _
    $region23: #{tpu_custom_call.1} parent=1 // pred_check_branch
      %2291 = sbr.rel (0) target = $region25
    $region24: #{tpu_custom_call.1} parent=1 // pred_region
      %s2293 = ssub.s32 256, 256
      %2294 = vsyncadd [#allocation7], %s2293
      %s2296 = sshll.u32 [#allocation6], 4
      %s2297 = int_to_ptr.vmem [resolvable:$true] %s2296
      %2299 = dma.vmem_to_hbm [thread:$0]  %s2297, 256, %s4, [#allocation7]
    $region25: #{tpu_custom_call.1} parent=1 // pred_fallthru
      _
    // Predicated region
    $region26: #{tpu_custom_call.1} parent=1 // pred_check
      _
    $region27: #{tpu_custom_call.1} parent=1 // pred_check_branch
      %2301 = sbr.rel (0) target = $region29
    $region28: #{tpu_custom_call.1} parent=1 // pred_region
      %2302 = dma.done [#allocation4], 128
    $region29: #{tpu_custom_call.1} parent=1 // pred_fallthru
      _
    // Predicated region
    $region30: #{tpu_custom_call.1} parent=1 // pred_check
      _
    $region31: #{tpu_custom_call.1} parent=1 // pred_check_branch
      %2304 = sbr.rel (0) target = $region33
    $region32: #{tpu_custom_call.1} parent=1 // pred_region
      %2305 = dma.done [#allocation7], 256
    $region33: #{tpu_custom_call.1} parent=1 // pred_fallthru
      _
    %2306 = vsyncpa [#allocation3], 1
    %2307 = vsyncpa [#allocation4], 1
    %2308 = vsyncpa [#allocation7], 1

</llo_original>
